<compile_context>
chip_gen: v6e
topology: v6e:2x2x1
jax: 0.10.0
libtpu: 0.0.40
codegen_flags: <defaults>
</compile_context>

<pallas_src>
import functools

import jax
import jax.numpy as jnp
from jax.experimental import pallas as pl
from jax.experimental.pallas import tpu as pltpu

LANE = 128
TB_MAX = 256              # batch-tile cap (sized with v7x's 64 MiB VMEM in mind)
TK_MAX = 1024             # K (input-feature) tile cap
W1_SLAB_BYTES = 24 << 20  # budget for the double-buffered bf16 w1 K-slab


def _round_up(n, m):
    return ((n + m - 1) // m) * m


def _cdiv(a, b):
    return -(-a // b)


def _sigmoid(x):
    # sigmoid(x) = (1 + tanh(x/2)) / 2 : transcendental work stays on the EUP,
    # no full-precision divide, no exp overflow.
    return 0.5 * (jnp.tanh(0.5 * x) + 1.0)


def _choose_k_tile(input_size, w1_cols):
    """K tile (multiple of 128) keeping the double-buffered bf16 w1 slab small."""
    tk = min(_round_up(input_size, LANE), TK_MAX)
    while tk > LANE and 2 * tk * w1_cols * 2 > W1_SLAB_BYTES:
        tk = max(LANE, (tk // 2) // LANE * LANE)
    return tk, _round_up(input_size, tk)


def tc_hybrid_kernel(
    x_ref, w1_ref,             # streamed bf16 K-slabs of x and the fused first matmul
    b1_ref,                    # fused conv + layer-0 gate biases (f32, applied once)
    wcnnfc_ref, bcnnfc_ref,    # cnn_fc with the gate_cnn logit folded in (extra 128 lanes)
    wl1_ref, bl1_ref,          # fused layer-1 BiLSTM gates
    wgl_ref, bgl_ref,          # thin fusion gate (lstm): logit in lane 0
    wfc_ref, bfc_ref,          # fc
    wcls_ref, bcls_ref,        # classifier (padded to 128 classes)
    out_ref,
    y1_acc,                    # f32 VMEM accumulator for the K-tiled first matmul
    *, cp, hp,
):
    k = pl.program_id(1)

    @pl.when(k == 0)
    def _():
        y1_acc[...] = jnp.zeros_like(y1_acc)

    # --- K-tiled dominant matmul: bf16 operands, f32 accumulation in VMEM ---
    y1_acc[...] += jnp.dot(x_ref[...], w1_ref[...], preferred_element_type=jnp.float32)

    @pl.when(k == pl.num_programs(1) - 1)
    def _():
        # bias applied exactly once, on the final K step
        y1 = y1_acc[...] + b1_ref[...]                                  # (TB, cp+3*hp)
        cnn_cat = jnp.maximum(y1[:, 0:cp], 0.0)                         # (TB, cp)
        i0 = _sigmoid(y1[:, cp:cp + hp])
        g0 = jnp.tanh(y1[:, cp + hp:cp + 2 * hp])
        o0 = _sigmoid(y1[:, cp + 2 * hp:cp + 3 * hp])
        h0 = o0 * jnp.tanh(i0 * g0)                                     # (TB, hp)

        # cnn_fc + folded fusion-gate(cnn) logit (extra 128-lane block, logit in lane hp)
        yc = (jnp.dot(cnn_cat, wcnnfc_ref[...],
                      preferred_element_type=jnp.float32) + bcnnfc_ref[...])
        cnn_feat = yc[:, 0:hp]                                          # (TB, hp)
        gate_cnn = _sigmoid(yc[:, hp:hp + 1])                           # (TB, 1)

        # layer-1 BiLSTM (both directions, all gates, one matmul)
        y2 = (jnp.dot(h0, wl1_ref[...],
                      preferred_element_type=jnp.float32) + bl1_ref[...])
        i1 = _sigmoid(y2[:, 0:hp])
        g1 = jnp.tanh(y2[:, hp:2 * hp])
        o1 = _sigmoid(y2[:, 2 * hp:3 * hp])
        lstm_feat = o1 * jnp.tanh(i1 * g1)                              # (TB, hp)

        # thin fusion-gate(lstm): logit lives in lane 0 of a (hp,128) weight
        gl = (jnp.dot(lstm_feat, wgl_ref[...],
                      preferred_element_type=jnp.float32) + bgl_ref[...])
        gate_lstm = _sigmoid(gl[:, 0:1])                                # (TB, 1)

        # gated fusion: per-row logits lane-broadcast across hp (XLU, free under MXU)
        final = gate_cnn * cnn_feat + gate_lstm * lstm_feat             # (TB, hp)

        # head: fc -> ReLU -> (dropout = identity at inference) -> classifier
        # TODO(synk): dropout is a no-op here (eval mode); training-mode masking not implemented.
        final = jnp.maximum(
            jnp.dot(final, wfc_ref[...],
                    preferred_element_type=jnp.float32) + bfc_ref[...], 0.0)
        out_ref[...] = (jnp.dot(final, wcls_ref[...],
                                preferred_element_type=jnp.float32) + bcls_ref[...])


def make_params(key, input_size, hidden_size, num_classes):
    """Deterministic synthetic parameters with the same shapes as the PyTorch module."""
    hd = hidden_size // 2
    keys = iter(jax.random.split(key, 40))

    def nrm(shape, scale=0.1):
        return scale * jax.random.normal(next(keys), shape, dtype=jnp.float32)

    return {
        "conv3_w": nrm((hidden_size, input_size, 3)), "conv3_b": nrm((hidden_size,)),
        "conv5_w": nrm((hidden_size, input_size, 5)), "conv5_b": nrm((hidden_size,)),
        "conv7_w": nrm((hidden_size, input_size, 7)), "conv7_b": nrm((hidden_size,)),
        "cnn_fc_w": nrm((hidden_size, 3 * hidden_size)), "cnn_fc_b": nrm((hidden_size,)),
        # LSTM weight_hh_* omitted: with zero initial state and seq_len=1 they never matter.
        "lstm_w_ih_l0": nrm((4 * hd, input_size)),
        "lstm_b_ih_l0": nrm((4 * hd,)), "lstm_b_hh_l0": nrm((4 * hd,)),
        "lstm_w_ih_l0_rev": nrm((4 * hd, input_size)),
        "lstm_b_ih_l0_rev": nrm((4 * hd,)), "lstm_b_hh_l0_rev": nrm((4 * hd,)),
        "lstm_w_ih_l1": nrm((4 * hd, hidden_size)),
        "lstm_b_ih_l1": nrm((4 * hd,)), "lstm_b_hh_l1": nrm((4 * hd,)),
        "lstm_w_ih_l1_rev": nrm((4 * hd, hidden_size)),
        "lstm_b_ih_l1_rev": nrm((4 * hd,)), "lstm_b_hh_l1_rev": nrm((4 * hd,)),
        "gate_cnn_w": nrm((1, hidden_size)), "gate_cnn_b": nrm((1,)),
        "gate_lstm_w": nrm((1, hidden_size)), "gate_lstm_b": nrm((1,)),
        "fc_w": nrm((128, hidden_size)), "fc_b": nrm((128,)),
        "cls_w": nrm((num_classes, 128)), "cls_b": nrm((num_classes,)),
    }


def pack_params(params, input_size, hidden_size, num_classes):
    """One-time packing of PyTorch-layout params into lane-aligned kernel layout."""
    assert hidden_size % 2 == 0, "hidden_size must be even (bidirectional LSTM)"
    H, D = hidden_size, input_size
    hd = H // 2
    HP = _round_up(H, LANE)            # padded feature width
    CP = _round_up(3 * H, LANE)        # padded cnn_cat width
    CLP = _round_up(num_classes, LANE)  # padded class width
    W1C = CP + 3 * HP                  # fused first-matmul output width
    _, d_pad = _choose_k_tile(D, W1C)
    f32 = jnp.float32

    def pad_cols(a, width):
        return jnp.pad(a, ((0, 0), (0, width - a.shape[1])))

    def pad_rows(a, height):
        return jnp.pad(a, ((0, height - a.shape[0]), (0, 0)))

    # --- fused matmul-1 columns: [conv3|conv5|conv7 | l0_i | l0_g | l0_o] ---
    conv_w = pad_cols(jnp.concatenate(
        [params["conv3_w"][:, :, 1].T, params["conv5_w"][:, :, 2].T,
         params["conv7_w"][:, :, 3].T], axis=1), CP)                              # (D, CP)
    conv_b = pad_cols(jnp.concatenate(
        [params["conv3_b"], params["conv5_b"], params["conv7_b"]])[None, :], CP)

    b_l0f = params["lstm_b_ih_l0"] + params["lstm_b_hh_l0"]
    b_l0b = params["lstm_b_ih_l0_rev"] + params["lstm_b_hh_l0_rev"]
    b_l1f = params["lstm_b_ih_l1"] + params["lstm_b_hh_l1"]
    b_l1b = params["lstm_b_ih_l1_rev"] + params["lstm_b_hh_l1_rev"]

    def gate_block(w_f, w_b, b_f, b_b, idx, row_pad=None):
        # one gate (PyTorch order i=0, g=2, o=3), fwd|bwd packed side by side
        sl = slice(idx * hd, (idx + 1) * hd)
        w = pad_cols(jnp.concatenate([w_f[sl].T, w_b[sl].T], axis=1), HP)
        if row_pad is not None:
            w = pad_rows(w, row_pad)
        b = pad_cols(jnp.concatenate([b_f[sl], b_b[sl]])[None, :], HP)
        return w, b

    wi0, bi0 = gate_block(params["lstm_w_ih_l0"], params["lstm_w_ih_l0_rev"], b_l0f, b_l0b, 0)
    wg0, bg0 = gate_block(params["lstm_w_ih_l0"], params["lstm_w_ih_l0_rev"], b_l0f, b_l0b, 2)
    wo0, bo0 = gate_block(params["lstm_w_ih_l0"], params["lstm_w_ih_l0_rev"], b_l0f, b_l0b, 3)
    w1 = pad_rows(jnp.concatenate([conv_w, wi0, wg0, wo0], axis=1), d_pad)         # (d_pad, W1C)
    b1 = jnp.concatenate([conv_b, bi0, bg0, bo0], axis=1)                          # (1, W1C)

    # --- fused layer-1 BiLSTM matmul: h0 @ [l1_i | l1_g | l1_o] ---
    wi1, bi1 = gate_block(params["lstm_w_ih_l1"], params["lstm_w_ih_l1_rev"], b_l1f, b_l1b, 0, HP)
    wg1, bg1 = gate_block(params["lstm_w_ih_l1"], params["lstm_w_ih_l1_rev"], b_l1f, b_l1b, 2, HP)
    wo1, bo1 = gate_block(params["lstm_w_ih_l1"], params["lstm_w_ih_l1_rev"], b_l1f, b_l1b, 3, HP)
    wl1 = jnp.concatenate([wi1, wg1, wo1], axis=1)                                 # (HP, 3*HP)
    bl1 = jnp.concatenate([bi1, bg1, bo1], axis=1)

    # --- cnn_fc with fusion-gate(cnn) logit folded in as an extra 128-lane block ---
    #   gate_logit = cnn_cat @ (cnn_fc_w.T @ gate_w.T) + (cnn_fc_b @ gate_w.T + gate_b)
    gate_col = params["cnn_fc_w"].T @ params["gate_cnn_w"][0]                      # (3H,)
    gate_bias = params["cnn_fc_b"] @ params["gate_cnn_w"][0] + params["gate_cnn_b"][0]
    extra_w = jnp.zeros((CP, LANE), f32).at[:3 * H, 0].set(gate_col)
    extra_b = jnp.zeros((1, LANE), f32).at[0, 0].set(gate_bias)
    wcnnfc = jnp.concatenate(
        [pad_rows(pad_cols(params["cnn_fc_w"].T, HP), CP), extra_w], axis=1)       # (CP, HP+128)
    bcnnfc = jnp.concatenate([pad_cols(params["cnn_fc_b"][None, :], HP), extra_b], axis=1)

    # --- thin fusion gate (lstm): logit lives in lane 0 of a (HP,128) weight ---
    wgl = jnp.zeros((HP, LANE), f32).at[:H, 0].set(params["gate_lstm_w"][0])
    bgl = jnp.zeros((1, LANE), f32).at[0, 0].set(params["gate_lstm_b"][0])

    # --- head ---
    wfc = pad_rows(params["fc_w"].T, HP)                                           # (HP, 128)
    bfc = params["fc_b"][None, :]
    wcls = pad_cols(params["cls_w"].T, CLP)                                        # (128, CLP)
    bcls = pad_cols(params["cls_b"][None, :], CLP)

    # Zero-padding invariant the kernel relies on: every padded lane carries zero
    # weight AND zero bias (so relu / gates keep padded lanes exactly 0).
    assert bool(jnp.all(b1[:, 3 * H:CP] == 0))
    for g in range(3):
        assert bool(jnp.all(b1[:, CP + g * HP + H:CP + (g + 1) * HP] == 0))
    assert bool(jnp.all(bcnnfc[:, H:HP] == 0)) and bool(jnp.all(bl1[:, H:HP] == 0))

    return dict(
        w1=w1.astype(jnp.bfloat16),   # streamed weight: bf16 halves HBM/VMEM traffic
        b1=b1, wcnnfc=wcnnfc, bcnnfc=bcnnfc, wl1=wl1, bl1=bl1,
        wgl=wgl, bgl=bgl, wfc=wfc, bfc=bfc, wcls=wcls, bcls=bcls)


_WEIGHT_ORDER = ("b1", "wcnnfc", "bcnnfc", "wl1", "bl1",
                 "wgl", "bgl", "wfc", "bfc", "wcls", "bcls")


def tc_hybrid_forward(x, packed, hidden_size, num_classes):
    B, D = x.shape
    HP = _round_up(hidden_size, LANE)
    CP = _round_up(3 * hidden_size, LANE)
    CLP = _round_up(num_classes, LANE)
    W1C = CP + 3 * HP
    assert packed["w1"].shape[1] == W1C

    # K (input-feature) tiling of the dominant x @ w1 matmul
    TK, D_pad = _choose_k_tile(D, W1C)
    assert packed["w1"].shape[0] == D_pad
    nk = D_pad // TK

    # Batch tiling: balance padding waste; >=2 batch steps for megacore when possible.
    nb = max(2 if B >= 64 else 1, _cdiv(B, TB_MAX))
    TB = _round_up(_cdiv(B, nb), 8)
    B_pad = nb * TB

    x = jnp.pad(x, ((0, B_pad - B), (0, D_pad - D))).astype(jnp.bfloat16)

    small = [packed[k] for k in _WEIGHT_ORDER]

    def w_spec(a):
        # resident across all grid steps; single-buffered (block never changes)
        return pl.BlockSpec(a.shape, lambda i, k: (0, 0), pipeline_mode=pl.Buffered(1))

    small_bytes = sum(int(a.size) * a.dtype.itemsize for a in small)
    vmem_est = (2 * TB * TK * 2          # streamed x slabs (bf16, double-buffered)
                + 2 * TK * W1C * 2       # streamed w1 slabs (bf16, double-buffered)
                + small_bytes            # single-buffered resident weights
                + TB * W1C * 4           # y1 accumulator
                + 2 * TB * CLP * 4       # output (double-buffered)
                + 12 * TB * HP * 4)      # elementwise temporaries headroom
    vmem_limit = int(min(60 << 20, max(32 << 20, vmem_est + (8 << 20))))

    cost = pl.CostEstimate(
        flops=2 * B_pad * (D_pad * W1C + CP * (HP + LANE) + 3 * HP * HP
                           + 2 * HP * LANE + LANE * CLP),
        transcendentals=10 * B_pad * HP,
        bytes_accessed=(B_pad * D_pad * 2 + D_pad * W1C * 2
                        + small_bytes + B_pad * CLP * 4),
    )

    kernel = functools.partial(tc_hybrid_kernel, cp=CP, hp=HP)
    out = pl.pallas_call(
        kernel,
        out_shape=jax.ShapeDtypeStruct((B_pad, CLP), jnp.float32),
        grid=(B_pad // TB, nk),
        in_specs=[pl.BlockSpec((TB, TK), lambda i, k: (i, k)),     # x K-slabs
                  pl.BlockSpec((TK, W1C), lambda i, k: (k, 0))]    # w1 K-slabs
                 + [w_spec(a) for a in small],
        out_specs=pl.BlockSpec((TB, CLP), lambda i, k: (i, 0)),
        scratch_shapes=[pltpu.VMEM((TB, W1C), jnp.float32)],
        compiler_params=pltpu.CompilerParams(
            dimension_semantics=("parallel", "arbitrary"),
            vmem_limit_bytes=vmem_limit),
        cost_estimate=cost,
    )(x, packed["w1"], *small)
    return out[:B, :num_classes]


tc_hybrid_forward_jit = jax.jit(tc_hybrid_forward, static_argnums=(2, 3))


def tc_hybrid_reference(x, params, hidden_size):
    """Pure-JAX reference (exactly-reduced forward); mirrors the kernel's bf16 input-side matmul."""
    hd = hidden_size // 2
    bf16 = jnp.bfloat16

    def mm1(a, w):  # bf16 operands, f32 accumulation, like the kernel's x @ w1
        return jnp.dot(a.astype(bf16), w.astype(bf16), preferred_element_type=jnp.float32)

    def lstm_dir(inp, w_ih, b_ih, b_hh, first_layer):
        g = (mm1(inp, w_ih.T) if first_layer else inp @ w_ih.T) + b_ih + b_hh
        i = jax.nn.sigmoid(g[:, :hd])
        gg = jnp.tanh(g[:, 2 * hd:3 * hd])
        o = jax.nn.sigmoid(g[:, 3 * hd:])
        return o * jnp.tanh(i * gg)

    cnn3 = jax.nn.relu(mm1(x, params["conv3_w"][:, :, 1].T) + params["conv3_b"])
    cnn5 = jax.nn.relu(mm1(x, params["conv5_w"][:, :, 2].T) + params["conv5_b"])
    cnn7 = jax.nn.relu(mm1(x, params["conv7_w"][:, :, 3].T) + params["conv7_b"])
    cnn_feat = (jnp.concatenate([cnn3, cnn5, cnn7], axis=1)
                @ params["cnn_fc_w"].T + params["cnn_fc_b"])

    h0 = jnp.concatenate(
        [lstm_dir(x, params["lstm_w_ih_l0"], params["lstm_b_ih_l0"],
                  params["lstm_b_hh_l0"], True),
         lstm_dir(x, params["lstm_w_ih_l0_rev"], params["lstm_b_ih_l0_rev"],
                  params["lstm_b_hh_l0_rev"], True)], axis=1)
    lstm_feat = jnp.concatenate(
        [lstm_dir(h0, params["lstm_w_ih_l1"], params["lstm_b_ih_l1"],
                  params["lstm_b_hh_l1"], False),
         lstm_dir(h0, params["lstm_w_ih_l1_rev"], params["lstm_b_ih_l1_rev"],
                  params["lstm_b_hh_l1_rev"], False)], axis=1)

    gate_cnn = jax.nn.sigmoid(cnn_feat @ params["gate_cnn_w"].T + params["gate_cnn_b"])
    gate_lstm = jax.nn.sigmoid(lstm_feat @ params["gate_lstm_w"].T + params["gate_lstm_b"])
    final = gate_cnn * cnn_feat + gate_lstm * lstm_feat
    final = jax.nn.relu(final @ params["fc_w"].T + params["fc_b"])
    return final @ params["cls_w"].T + params["cls_b"]


if __name__ == "__main__":
    B, INPUT_SIZE, HIDDEN_SIZE, NUM_CLASSES = 2, 32, 32, 4

    key = jax.random.PRNGKey(0)
    k_params, k_x = jax.random.split(key)
    params = make_params(k_params, INPUT_SIZE, HIDDEN_SIZE, NUM_CLASSES)
    x = jax.random.normal(k_x, (B, INPUT_SIZE), dtype=jnp.float32)

    packed = pack_params(params, INPUT_SIZE, HIDDEN_SIZE, NUM_CLASSES)  # one-time packing

    out = tc_hybrid_forward_jit(x, packed, HIDDEN_SIZE, NUM_CLASSES)
    out = jax.block_until_ready(out)

    ref = tc_hybrid_reference(x, params, HIDDEN_SIZE)
    assert out.shape == (B, NUM_CLASSES)
    assert jnp.allclose(out, ref, atol=1e-3, rtol=1e-3), (out, ref)

    print("KERNEL_OK")
</pallas_src>

<mosaic_0001>
module attributes {stable_mosaic.version = 11 : i64} {
  func.func @tc_hybrid_kernel(%arg0: i32, %arg1: i32, %arg2: memref<8x128xbf16, #tpu.memory_space<vmem>>, %arg3: memref<128x512xbf16, #tpu.memory_space<vmem>>, %arg4: memref<1x512xf32, #tpu.memory_space<vmem>>, %arg5: memref<128x256xf32, #tpu.memory_space<vmem>>, %arg6: memref<1x256xf32, #tpu.memory_space<vmem>>, %arg7: memref<128x384xf32, #tpu.memory_space<vmem>>, %arg8: memref<1x384xf32, #tpu.memory_space<vmem>>, %arg9: memref<128x128xf32, #tpu.memory_space<vmem>>, %arg10: memref<1x128xf32, #tpu.memory_space<vmem>>, %arg11: memref<128x128xf32, #tpu.memory_space<vmem>>, %arg12: memref<1x128xf32, #tpu.memory_space<vmem>>, %arg13: memref<128x128xf32, #tpu.memory_space<vmem>>, %arg14: memref<1x128xf32, #tpu.memory_space<vmem>>, %arg15: memref<8x128xf32, #tpu.memory_space<vmem>>, %arg16: memref<8x512xf32, #tpu.memory_space<vmem>>) attributes {dimension_semantics = [#tpu.dimension_semantics<parallel>, #tpu.dimension_semantics<arbitrary>], iteration_bounds = array<i64: 1, 1>, scalar_prefetch = 0 : i64, scratch_operands = 1 : i64, tpu.core_type = #tpu.core_type<tc>, window_params = [{transform_indices = @transform_0, window_bounds = array<i64: 8, 128>}, {transform_indices = @transform_1, window_bounds = array<i64: 128, 512>}, {pipeline_mode = #tpu.pipeline_mode<synchronous>, transform_indices = @transform_2, window_bounds = array<i64: 1, 512>}, {pipeline_mode = #tpu.pipeline_mode<synchronous>, transform_indices = @transform_3, window_bounds = array<i64: 128, 256>}, {pipeline_mode = #tpu.pipeline_mode<synchronous>, transform_indices = @transform_4, window_bounds = array<i64: 1, 256>}, {pipeline_mode = #tpu.pipeline_mode<synchronous>, transform_indices = @transform_5, window_bounds = array<i64: 128, 384>}, {pipeline_mode = #tpu.pipeline_mode<synchronous>, transform_indices = @transform_6, window_bounds = array<i64: 1, 384>}, {pipeline_mode = #tpu.pipeline_mode<synchronous>, transform_indices = @transform_7, window_bounds = array<i64: 128, 128>}, {pipeline_mode = #tpu.pipeline_mode<synchronous>, transform_indices = @transform_8, window_bounds = array<i64: 1, 128>}, {pipeline_mode = #tpu.pipeline_mode<synchronous>, transform_indices = @transform_9, window_bounds = array<i64: 128, 128>}, {pipeline_mode = #tpu.pipeline_mode<synchronous>, transform_indices = @transform_10, window_bounds = array<i64: 1, 128>}, {pipeline_mode = #tpu.pipeline_mode<synchronous>, transform_indices = @transform_11, window_bounds = array<i64: 128, 128>}, {pipeline_mode = #tpu.pipeline_mode<synchronous>, transform_indices = @transform_12, window_bounds = array<i64: 1, 128>}, {transform_indices = @transform_13, window_bounds = array<i64: 8, 128>}]} {
    %c0_i32 = arith.constant 0 : i32
    %0 = arith.cmpi eq, %arg1, %c0_i32 : i32
    %1 = arith.extui %0 : i1 to i32
    %c0_i32_0 = arith.constant 0 : i32
    %2 = arith.cmpi ne, %1, %c0_i32_0 : i32
    scf.if %2 {
      %cst_10 = arith.constant 0.000000e+00 : f32
      %12 = vector.broadcast %cst_10 : f32 to vector<8x512xf32>
      %c0_11 = arith.constant 0 : index
      %c0_12 = arith.constant 0 : index
      %13 = vector.load %arg16[%c0_11, %c0_12] : memref<8x512xf32, #tpu.memory_space<vmem>>, vector<8x512xf32>
      tpu.vector_store %arg16[%c0_11, %c0_12], %12 {strides = array<i32>} : memref<8x512xf32, #tpu.memory_space<vmem>>, vector<8x512xf32>,
    } else {
    }
    %c0 = arith.constant 0 : index
    %c0_1 = arith.constant 0 : index
    %3 = vector.load %arg16[%c0, %c0_1] : memref<8x512xf32, #tpu.memory_space<vmem>>, vector<8x512xf32>
    %c0_2 = arith.constant 0 : index
    %c0_3 = arith.constant 0 : index
    %4 = vector.load %arg2[%c0_2, %c0_3] : memref<8x128xbf16, #tpu.memory_space<vmem>>, vector<8x128xbf16>
    %c0_4 = arith.constant 0 : index
    %c0_5 = arith.constant 0 : index
    %5 = vector.load %arg3[%c0_4, %c0_5] : memref<128x512xbf16, #tpu.memory_space<vmem>>, vector<128x512xbf16>
    %cst = arith.constant dense<0.000000e+00> : vector<8x512xf32>
    %6 = tpu.matmul %4, %5, %cst {dimension_numbers = #tpu.dot_dimension_numbers<[1], [0], [0], [1], [0, 0, 1, 1], [], []>} : vector<8x128xbf16>, vector<128x512xbf16>, vector<8x512xf32> -> vector<8x512xf32>
    %7 = arith.addf %3, %6 : vector<8x512xf32>
    %c0_6 = arith.constant 0 : index
    %c0_7 = arith.constant 0 : index
    %8 = vector.load %arg16[%c0_6, %c0_7] : memref<8x512xf32, #tpu.memory_space<vmem>>, vector<8x512xf32>
    tpu.vector_store %arg16[%c0_6, %c0_7], %7 {strides = array<i32>} : memref<8x512xf32, #tpu.memory_space<vmem>>, vector<8x512xf32>,
    %c0_i32_8 = arith.constant 0 : i32
    %9 = arith.cmpi eq, %arg1, %c0_i32_8 : i32
    %10 = arith.extui %9 : i1 to i32
    %c0_i32_9 = arith.constant 0 : i32
    %11 = arith.cmpi ne, %10, %c0_i32_9 : i32
    scf.if %11 {
      %c0_10 = arith.constant 0 : index
      %c0_11 = arith.constant 0 : index
      %12 = vector.load %arg16[%c0_10, %c0_11] : memref<8x512xf32, #tpu.memory_space<vmem>>, vector<8x512xf32>
      %c0_12 = arith.constant 0 : index
      %c0_13 = arith.constant 0 : index
      %13 = vector.load %arg4[%c0_12, %c0_13] : memref<1x512xf32, #tpu.memory_space<vmem>>, vector<1x512xf32>
      %14 = vector.broadcast %13 : vector<1x512xf32> to vector<8x512xf32>
      %15 = arith.addf %12, %14 : vector<8x512xf32>
      %16 = vector.extract_strided_slice %15 {offsets = [0, 0], sizes = [8, 128], strides = [1, 1]} : vector<8x512xf32> to vector<8x128xf32>
      %cst_14 = arith.constant 0.000000e+00 : f32
      %17 = vector.broadcast %cst_14 : f32 to vector<8x128xf32>
      %18 = arith.maximumf %16, %17 : vector<8x128xf32>
      %19 = vector.extract_strided_slice %15 {offsets = [0, 128], sizes = [8, 128], strides = [1, 1]} : vector<8x512xf32> to vector<8x128xf32>
      %cst_15 = arith.constant 5.000000e-01 : f32
      %20 = vector.broadcast %cst_15 : f32 to vector<8x128xf32>
      %21 = arith.mulf %20, %19 : vector<8x128xf32>
      %22 = math.tanh %21 : vector<8x128xf32>
      %cst_16 = arith.constant 1.000000e+00 : f32
      %23 = vector.broadcast %cst_16 : f32 to vector<8x128xf32>
      %24 = arith.addf %22, %23 : vector<8x128xf32>
      %cst_17 = arith.constant 5.000000e-01 : f32
      %25 = vector.broadcast %cst_17 : f32 to vector<8x128xf32>
      %26 = arith.mulf %25, %24 : vector<8x128xf32>
      %27 = vector.extract_strided_slice %15 {offsets = [0, 256], sizes = [8, 128], strides = [1, 1]} : vector<8x512xf32> to vector<8x128xf32>
      %28 = math.tanh %27 : vector<8x128xf32>
      %29 = vector.extract_strided_slice %15 {offsets = [0, 384], sizes = [8, 128], strides = [1, 1]} : vector<8x512xf32> to vector<8x128xf32>
      %cst_18 = arith.constant 5.000000e-01 : f32
      %30 = vector.broadcast %cst_18 : f32 to vector<8x128xf32>
      %31 = arith.mulf %30, %29 : vector<8x128xf32>
      %32 = math.tanh %31 : vector<8x128xf32>
      %cst_19 = arith.constant 1.000000e+00 : f32
      %33 = vector.broadcast %cst_19 : f32 to vector<8x128xf32>
      %34 = arith.addf %32, %33 : vector<8x128xf32>
      %cst_20 = arith.constant 5.000000e-01 : f32
      %35 = vector.broadcast %cst_20 : f32 to vector<8x128xf32>
      %36 = arith.mulf %35, %34 : vector<8x128xf32>
      %37 = arith.mulf %26, %28 : vector<8x128xf32>
      %38 = math.tanh %37 : vector<8x128xf32>
      %39 = arith.mulf %36, %38 : vector<8x128xf32>
      %c0_21 = arith.constant 0 : index
      %c0_22 = arith.constant 0 : index
      %40 = vector.load %arg5[%c0_21, %c0_22] : memref<128x256xf32, #tpu.memory_space<vmem>>, vector<128x256xf32>
      %cst_23 = arith.constant dense<0.000000e+00> : vector<8x256xf32>
      %41 = tpu.matmul %18, %40, %cst_23 {dimension_numbers = #tpu.dot_dimension_numbers<[1], [0], [0], [1], [0, 0, 1, 1], [], []>} : vector<8x128xf32>, vector<128x256xf32>, vector<8x256xf32> -> vector<8x256xf32>
      %c0_24 = arith.constant 0 : index
      %c0_25 = arith.constant 0 : index
      %42 = vector.load %arg6[%c0_24, %c0_25] : memref<1x256xf32, #tpu.memory_space<vmem>>, vector<1x256xf32>
      %43 = vector.broadcast %42 : vector<1x256xf32> to vector<8x256xf32>
      %44 = arith.addf %41, %43 : vector<8x256xf32>
      %45 = vector.extract_strided_slice %44 {offsets = [0, 0], sizes = [8, 128], strides = [1, 1]} : vector<8x256xf32> to vector<8x128xf32>
      %46 = vector.extract_strided_slice %44 {offsets = [0, 128], sizes = [8, 1], strides = [1, 1]} : vector<8x256xf32> to vector<8x1xf32>
      %cst_26 = arith.constant 5.000000e-01 : f32
      %47 = vector.broadcast %cst_26 : f32 to vector<8x1xf32>
      %48 = arith.mulf %47, %46 : vector<8x1xf32>
      %49 = math.tanh %48 : vector<8x1xf32>
      %cst_27 = arith.constant 1.000000e+00 : f32
      %50 = vector.broadcast %cst_27 : f32 to vector<8x1xf32>
      %51 = arith.addf %49, %50 : vector<8x1xf32>
      %cst_28 = arith.constant 5.000000e-01 : f32
      %52 = vector.broadcast %cst_28 : f32 to vector<8x1xf32>
      %53 = arith.mulf %52, %51 : vector<8x1xf32>
      %c0_29 = arith.constant 0 : index
      %c0_30 = arith.constant 0 : index
      %54 = vector.load %arg7[%c0_29, %c0_30] : memref<128x384xf32, #tpu.memory_space<vmem>>, vector<128x384xf32>
      %cst_31 = arith.constant dense<0.000000e+00> : vector<8x384xf32>
      %55 = tpu.matmul %39, %54, %cst_31 {dimension_numbers = #tpu.dot_dimension_numbers<[1], [0], [0], [1], [0, 0, 1, 1], [], []>} : vector<8x128xf32>, vector<128x384xf32>, vector<8x384xf32> -> vector<8x384xf32>
      %c0_32 = arith.constant 0 : index
      %c0_33 = arith.constant 0 : index
      %56 = vector.load %arg8[%c0_32, %c0_33] : memref<1x384xf32, #tpu.memory_space<vmem>>, vector<1x384xf32>
      %57 = vector.broadcast %56 : vector<1x384xf32> to vector<8x384xf32>
      %58 = arith.addf %55, %57 : vector<8x384xf32>
      %59 = vector.extract_strided_slice %58 {offsets = [0, 0], sizes = [8, 128], strides = [1, 1]} : vector<8x384xf32> to vector<8x128xf32>
      %cst_34 = arith.constant 5.000000e-01 : f32
      %60 = vector.broadcast %cst_34 : f32 to vector<8x128xf32>
      %61 = arith.mulf %60, %59 : vector<8x128xf32>
      %62 = math.tanh %61 : vector<8x128xf32>
      %cst_35 = arith.constant 1.000000e+00 : f32
      %63 = vector.broadcast %cst_35 : f32 to vector<8x128xf32>
      %64 = arith.addf %62, %63 : vector<8x128xf32>
      %cst_36 = arith.constant 5.000000e-01 : f32
      %65 = vector.broadcast %cst_36 : f32 to vector<8x128xf32>
      %66 = arith.mulf %65, %64 : vector<8x128xf32>
      %67 = vector.extract_strided_slice %58 {offsets = [0, 128], sizes = [8, 128], strides = [1, 1]} : vector<8x384xf32> to vector<8x128xf32>
      %68 = math.tanh %67 : vector<8x128xf32>
      %69 = vector.extract_strided_slice %58 {offsets = [0, 256], sizes = [8, 128], strides = [1, 1]} : vector<8x384xf32> to vector<8x128xf32>
      %cst_37 = arith.constant 5.000000e-01 : f32
      %70 = vector.broadcast %cst_37 : f32 to vector<8x128xf32>
      %71 = arith.mulf %70, %69 : vector<8x128xf32>
      %72 = math.tanh %71 : vector<8x128xf32>
      %cst_38 = arith.constant 1.000000e+00 : f32
      %73 = vector.broadcast %cst_38 : f32 to vector<8x128xf32>
      %74 = arith.addf %72, %73 : vector<8x128xf32>
      %cst_39 = arith.constant 5.000000e-01 : f32
      %75 = vector.broadcast %cst_39 : f32 to vector<8x128xf32>
      %76 = arith.mulf %75, %74 : vector<8x128xf32>
      %77 = arith.mulf %66, %68 : vector<8x128xf32>
      %78 = math.tanh %77 : vector<8x128xf32>
      %79 = arith.mulf %76, %78 : vector<8x128xf32>
      %c0_40 = arith.constant 0 : index
      %c0_41 = arith.constant 0 : index
      %80 = vector.load %arg9[%c0_40, %c0_41] : memref<128x128xf32, #tpu.memory_space<vmem>>, vector<128x128xf32>
      %cst_42 = arith.constant dense<0.000000e+00> : vector<8x128xf32>
      %81 = tpu.matmul %79, %80, %cst_42 {dimension_numbers = #tpu.dot_dimension_numbers<[1], [0], [0], [1], [0, 0, 1, 1], [], []>} : vector<8x128xf32>, vector<128x128xf32>, vector<8x128xf32> -> vector<8x128xf32>
      %c0_43 = arith.constant 0 : index
      %c0_44 = arith.constant 0 : index
      %82 = vector.load %arg10[%c0_43, %c0_44] : memref<1x128xf32, #tpu.memory_space<vmem>>, vector<1x128xf32>
      %83 = vector.broadcast %82 : vector<1x128xf32> to vector<8x128xf32>
      %84 = arith.addf %81, %83 : vector<8x128xf32>
      %85 = vector.extract_strided_slice %84 {offsets = [0, 0], sizes = [8, 1], strides = [1, 1]} : vector<8x128xf32> to vector<8x1xf32>
      %cst_45 = arith.constant 5.000000e-01 : f32
      %86 = vector.broadcast %cst_45 : f32 to vector<8x1xf32>
      %87 = arith.mulf %86, %85 : vector<8x1xf32>
      %88 = math.tanh %87 : vector<8x1xf32>
      %cst_46 = arith.constant 1.000000e+00 : f32
      %89 = vector.broadcast %cst_46 : f32 to vector<8x1xf32>
      %90 = arith.addf %88, %89 : vector<8x1xf32>
      %cst_47 = arith.constant 5.000000e-01 : f32
      %91 = vector.broadcast %cst_47 : f32 to vector<8x1xf32>
      %92 = arith.mulf %91, %90 : vector<8x1xf32>
      %93 = vector.broadcast %53 : vector<8x1xf32> to vector<8x128xf32>
      %94 = arith.mulf %93, %45 : vector<8x128xf32>
      %95 = vector.broadcast %92 : vector<8x1xf32> to vector<8x128xf32>
      %96 = arith.mulf %95, %79 : vector<8x128xf32>
      %97 = arith.addf %94, %96 : vector<8x128xf32>
      %c0_48 = arith.constant 0 : index
      %c0_49 = arith.constant 0 : index
      %98 = vector.load %arg11[%c0_48, %c0_49] : memref<128x128xf32, #tpu.memory_space<vmem>>, vector<128x128xf32>
      %cst_50 = arith.constant dense<0.000000e+00> : vector<8x128xf32>
      %99 = tpu.matmul %97, %98, %cst_50 {dimension_numbers = #tpu.dot_dimension_numbers<[1], [0], [0], [1], [0, 0, 1, 1], [], []>} : vector<8x128xf32>, vector<128x128xf32>, vector<8x128xf32> -> vector<8x128xf32>
      %c0_51 = arith.constant 0 : index
      %c0_52 = arith.constant 0 : index
      %100 = vector.load %arg12[%c0_51, %c0_52] : memref<1x128xf32, #tpu.memory_space<vmem>>, vector<1x128xf32>
      %101 = vector.broadcast %100 : vector<1x128xf32> to vector<8x128xf32>
      %102 = arith.addf %99, %101 : vector<8x128xf32>
      %cst_53 = arith.constant 0.000000e+00 : f32
      %103 = vector.broadcast %cst_53 : f32 to vector<8x128xf32>
      %104 = arith.maximumf %102, %103 : vector<8x128xf32>
      %c0_54 = arith.constant 0 : index
      %c0_55 = arith.constant 0 : index
      %105 = vector.load %arg13[%c0_54, %c0_55] : memref<128x128xf32, #tpu.memory_space<vmem>>, vector<128x128xf32>
      %cst_56 = arith.constant dense<0.000000e+00> : vector<8x128xf32>
      %106 = tpu.matmul %104, %105, %cst_56 {dimension_numbers = #tpu.dot_dimension_numbers<[1], [0], [0], [1], [0, 0, 1, 1], [], []>} : vector<8x128xf32>, vector<128x128xf32>, vector<8x128xf32> -> vector<8x128xf32>
      %c0_57 = arith.constant 0 : index
      %c0_58 = arith.constant 0 : index
      %107 = vector.load %arg14[%c0_57, %c0_58] : memref<1x128xf32, #tpu.memory_space<vmem>>, vector<1x128xf32>
      %108 = vector.broadcast %107 : vector<1x128xf32> to vector<8x128xf32>
      %109 = arith.addf %106, %108 : vector<8x128xf32>
      %c0_59 = arith.constant 0 : index
      %c0_60 = arith.constant 0 : index
      %110 = vector.load %arg15[%c0_59, %c0_60] : memref<8x128xf32, #tpu.memory_space<vmem>>, vector<8x128xf32>
      tpu.vector_store %arg15[%c0_59, %c0_60], %109 {strides = array<i32>} : memref<8x128xf32, #tpu.memory_space<vmem>>, vector<8x128xf32>,
    } else {
    }
    return
  }
  func.func @transform_0(%arg0: i32, %arg1: i32) -> (i32, i32) {
    %c0_i32 = arith.constant 0 : i32
    return %arg0, %arg1 : i32, i32
  }
  func.func @transform_1(%arg0: i32, %arg1: i32) -> (i32, i32) {
    %c0_i32 = arith.constant 0 : i32
    %c0_i32_0 = arith.constant 0 : i32
    return %arg1, %c0_i32 : i32, i32
  }
  func.func @transform_2(%arg0: i32, %arg1: i32) -> (i32, i32) {
    %c0_i32 = arith.constant 0 : i32
    %c0_i32_0 = arith.constant 0 : i32
    %c0_i32_1 = arith.constant 0 : i32
    return %c0_i32, %c0_i32_0 : i32, i32
  }
  func.func @transform_3(%arg0: i32, %arg1: i32) -> (i32, i32) {
    %c0_i32 = arith.constant 0 : i32
    %c0_i32_0 = arith.constant 0 : i32
    %c0_i32_1 = arith.constant 0 : i32
    return %c0_i32, %c0_i32_0 : i32, i32
  }
  func.func @transform_4(%arg0: i32, %arg1: i32) -> (i32, i32) {
    %c0_i32 = arith.constant 0 : i32
    %c0_i32_0 = arith.constant 0 : i32
    %c0_i32_1 = arith.constant 0 : i32
    return %c0_i32, %c0_i32_0 : i32, i32
  }
  func.func @transform_5(%arg0: i32, %arg1: i32) -> (i32, i32) {
    %c0_i32 = arith.constant 0 : i32
    %c0_i32_0 = arith.constant 0 : i32
    %c0_i32_1 = arith.constant 0 : i32
    return %c0_i32, %c0_i32_0 : i32, i32
  }
  func.func @transform_6(%arg0: i32, %arg1: i32) -> (i32, i32) {
    %c0_i32 = arith.constant 0 : i32
    %c0_i32_0 = arith.constant 0 : i32
    %c0_i32_1 = arith.constant 0 : i32
    return %c0_i32, %c0_i32_0 : i32, i32
  }
  func.func @transform_7(%arg0: i32, %arg1: i32) -> (i32, i32) {
    %c0_i32 = arith.constant 0 : i32
    %c0_i32_0 = arith.constant 0 : i32
    %c0_i32_1 = arith.constant 0 : i32
    return %c0_i32, %c0_i32_0 : i32, i32
  }
  func.func @transform_8(%arg0: i32, %arg1: i32) -> (i32, i32) {
    %c0_i32 = arith.constant 0 : i32
    %c0_i32_0 = arith.constant 0 : i32
    %c0_i32_1 = arith.constant 0 : i32
    return %c0_i32, %c0_i32_0 : i32, i32
  }
  func.func @transform_9(%arg0: i32, %arg1: i32) -> (i32, i32) {
    %c0_i32 = arith.constant 0 : i32
    %c0_i32_0 = arith.constant 0 : i32
    %c0_i32_1 = arith.constant 0 : i32
    return %c0_i32, %c0_i32_0 : i32, i32
  }
  func.func @transform_10(%arg0: i32, %arg1: i32) -> (i32, i32) {
    %c0_i32 = arith.constant 0 : i32
    %c0_i32_0 = arith.constant 0 : i32
    %c0_i32_1 = arith.constant 0 : i32
    return %c0_i32, %c0_i32_0 : i32, i32
  }
  func.func @transform_11(%arg0: i32, %arg1: i32) -> (i32, i32) {
    %c0_i32 = arith.constant 0 : i32
    %c0_i32_0 = arith.constant 0 : i32
    %c0_i32_1 = arith.constant 0 : i32
    return %c0_i32, %c0_i32_0 : i32, i32
  }
  func.func @transform_12(%arg0: i32, %arg1: i32) -> (i32, i32) {
    %c0_i32 = arith.constant 0 : i32
    %c0_i32_0 = arith.constant 0 : i32
    %c0_i32_1 = arith.constant 0 : i32
    return %c0_i32, %c0_i32_0 : i32, i32
  }
  func.func @transform_13(%arg0: i32, %arg1: i32) -> (i32, i32) {
    %c0_i32 = arith.constant 0 : i32
    %c0_i32_0 = arith.constant 0 : i32
    return %arg0, %c0_i32 : i32, i32
  }
}

</mosaic_0001>

<llo_original>
// kernel: tc_hybrid_forward.1
$region0: #{tc_hybrid_forward.1}
  #allocation0 [shape = 'u32[]', space=smem, size = 0x4, offset = 0x4, fixed_abs, tag = 'smem constant byte address 0x4 - core index']
  #allocation1 [shape = 'u32[144,128]{1,0:T(1,128)}', space=vmem, size = 0x12000, scoped, tag = 'internal scratch']
  #allocation2 [shape = 'f32[8,512]{1,0:T(8,128)}', space=vmem, size = 0x4000, scoped, tag = 'scratch operand']
  %s0 = inlined_call_operand.vmem [shape: bf16[8,128], index: 0, kind: input, shape index: {}]
  %s1 = inlined_call_operand.hbm [shape: bf16[128,512], index: 1, kind: input, shape index: {}]
  %s2 = inlined_call_operand.vmem [shape: f32[1,512], index: 2, kind: input, shape index: {}]
  %s3 = inlined_call_operand.hbm [shape: f32[128,256], index: 3, kind: input, shape index: {}]
  %s4 = inlined_call_operand.vmem [shape: f32[1,256], index: 4, kind: input, shape index: {}]
  %s5 = inlined_call_operand.hbm [shape: f32[128,384], index: 5, kind: input, shape index: {}]
  %s6 = inlined_call_operand.vmem [shape: f32[1,384], index: 6, kind: input, shape index: {}]
  %s7 = inlined_call_operand.hbm [shape: f32[128,128], index: 7, kind: input, shape index: {}]
  %s8 = inlined_call_operand.vmem [shape: f32[1,128], index: 8, kind: input, shape index: {}]
  %s9 = inlined_call_operand.hbm [shape: f32[128,128], index: 9, kind: input, shape index: {}]
  %s10 = inlined_call_operand.vmem [shape: f32[1,128], index: 10, kind: input, shape index: {}]
  %s11 = inlined_call_operand.hbm [shape: f32[128,128], index: 11, kind: input, shape index: {}]
  %s12 = inlined_call_operand.vmem [shape: f32[1,128], index: 12, kind: input, shape index: {}]
  %s13 = inlined_call_operand.vmem [shape: f32[8,128], index: 13, kind: output, shape index: {}]
  %s14 = sld [smem:[#allocation0]]
  $region94: #{tc_hybrid_forward.1} parent=0
    _
  %s16 = ssub.s32 1, %s14
  %s17 = scalar_select 0, %s16, %s14
  $region1: #{tc_hybrid_forward.1} parent=0
    #allocation3 [shape = 'u8[131072]{0}', space=vmem, size = 0x20000, scoped, tag = 'input window, operand 1, single buffered']
    #allocation4 [shape = 's32[1]{0}', space=sflag, size = 0x4, scoped, tag = 'scoped memory for tc_hybrid_forward.1']
    #allocation5 [shape = 'u8[131072]{0}', space=vmem, size = 0x20000, scoped, tag = 'input window, operand 3, single buffered']
    #allocation6 [shape = 's32[1]{0}', space=sflag, size = 0x4, scoped, tag = 'scoped memory for tc_hybrid_forward.1']
    #allocation7 [shape = 'u8[196608]{0}', space=vmem, size = 0x30000, scoped, tag = 'input window, operand 5, single buffered']
    #allocation8 [shape = 'u8[65536]{0}', space=vmem, size = 0x10000, scoped, tag = 'input window, operand 7, single buffered']
    #allocation9 [shape = 's32[1]{0}', space=sflag, size = 0x4, scoped, tag = 'scoped memory for tc_hybrid_forward.1']
    #allocation10 [shape = 'u8[65536]{0}', space=vmem, size = 0x10000, scoped, tag = 'input window, operand 9, single buffered']
    #allocation11 [shape = 'u8[65536]{0}', space=vmem, size = 0x10000, scoped, tag = 'input window, operand 11, single buffered']
    #allocation12 [shape = 's32[1]{0}', space=sflag, size = 0x4, scoped, tag = 'scoped memory for tc_hybrid_forward.1']
    %18 = vsyncpa [#allocation4], 0
    %19 = vsyncpa [#allocation6], 0
    %20 = vsyncpa [#allocation9], 0
    %21 = vsyncpa [#allocation12], 0
    // Predicated region
    $region2: #{tc_hybrid_forward.1} parent=1 // pred_check
      _
    $region3: #{tc_hybrid_forward.1} parent=1 // pred_check_branch
      %23 = sbr.rel (0) target = $region5
    $region4: #{tc_hybrid_forward.1} parent=1 // pred_region
      _
    $region5: #{tc_hybrid_forward.1} parent=1 // pred_fallthru
      _
    // Predicated region
    $region6: #{tc_hybrid_forward.1} parent=1 // pred_check
      _
    $region7: #{tc_hybrid_forward.1} parent=1 // pred_check_branch
      %25 = sbr.rel (0) target = $region9
    $region8: #{tc_hybrid_forward.1} parent=1 // pred_region
      %s27 = ssub.s32 4096, 4096
      %28 = vsyncadd [#allocation4], %s27
      %s29 = sshll.u32 [#allocation3], 4
      %s30 = int_to_ptr.vmem [resolvable:$true] %s29
      %35 = dma.hbm_to_vmem [thread:$0]  %s1, 4096, %s30, [#allocation4], 256, 256, 16
    $region9: #{tc_hybrid_forward.1} parent=1 // pred_fallthru
      _
    // Predicated region
    $region10: #{tc_hybrid_forward.1} parent=1 // pred_check
      _
    $region11: #{tc_hybrid_forward.1} parent=1 // pred_check_branch
      %37 = sbr.rel (0) target = $region13
    $region12: #{tc_hybrid_forward.1} parent=1 // pred_region
      _
    $region13: #{tc_hybrid_forward.1} parent=1 // pred_fallthru
      _
    // Predicated region
    $region14: #{tc_hybrid_forward.1} parent=1 // pred_check
      _
    $region15: #{tc_hybrid_forward.1} parent=1 // pred_check_branch
      %39 = sbr.rel (0) target = $region17
    $region16: #{tc_hybrid_forward.1} parent=1 // pred_region
      %s41 = ssub.s32 4096, 4096
      %42 = vsyncadd [#allocation6], %s41
      %s43 = sshll.u32 [#allocation5], 4
      %s44 = int_to_ptr.vmem [resolvable:$true] %s43
      %49 = dma.hbm_to_vmem [thread:$0]  %s3, 4096, %s44, [#allocation6], 256, 256, 16
    $region17: #{tc_hybrid_forward.1} parent=1 // pred_fallthru
      _
    // Predicated region
    $region18: #{tc_hybrid_forward.1} parent=1 // pred_check
      _
    $region19: #{tc_hybrid_forward.1} parent=1 // pred_check_branch
      %51 = sbr.rel (0) target = $region21
    $region20: #{tc_hybrid_forward.1} parent=1 // pred_region
      _
    $region21: #{tc_hybrid_forward.1} parent=1 // pred_fallthru
      _
    // Predicated region
    $region22: #{tc_hybrid_forward.1} parent=1 // pred_check
      _
    $region23: #{tc_hybrid_forward.1} parent=1 // pred_check_branch
      %53 = sbr.rel (0) target = $region25
    $region24: #{tc_hybrid_forward.1} parent=1 // pred_region
      %s55 = ssub.s32 6144, 6144
      %56 = vsyncadd [#allocation6], %s55
      %s57 = sshll.u32 [#allocation7], 4
      %s58 = int_to_ptr.vmem [resolvable:$true] %s57
      %63 = dma.hbm_to_vmem [thread:$0]  %s5, 6144, %s58, [#allocation6], 384, 384, 24
    $region25: #{tc_hybrid_forward.1} parent=1 // pred_fallthru
      _
    // Predicated region
    $region26: #{tc_hybrid_forward.1} parent=1 // pred_check
      _
    $region27: #{tc_hybrid_forward.1} parent=1 // pred_check_branch
      %65 = sbr.rel (0) target = $region29
    $region28: #{tc_hybrid_forward.1} parent=1 // pred_region
      _
    $region29: #{tc_hybrid_forward.1} parent=1 // pred_fallthru
      _
    // Predicated region
    $region30: #{tc_hybrid_forward.1} parent=1 // pred_check
      _
    $region31: #{tc_hybrid_forward.1} parent=1 // pred_check_branch
      %67 = sbr.rel (0) target = $region33
    $region32: #{tc_hybrid_forward.1} parent=1 // pred_region
      %s69 = ssub.s32 2048, 2048
      %70 = vsyncadd [#allocation9], %s69
      %s71 = sshll.u32 [#allocation8], 4
      %s72 = int_to_ptr.vmem [resolvable:$true] %s71
      %77 = dma.hbm_to_vmem [thread:$0]  %s7, 2048, %s72, [#allocation9], 128, 128, 8
    $region33: #{tc_hybrid_forward.1} parent=1 // pred_fallthru
      _
    // Predicated region
    $region34: #{tc_hybrid_forward.1} parent=1 // pred_check
      _
    $region35: #{tc_hybrid_forward.1} parent=1 // pred_check_branch
      %79 = sbr.rel (0) target = $region37
    $region36: #{tc_hybrid_forward.1} parent=1 // pred_region
      _
    $region37: #{tc_hybrid_forward.1} parent=1 // pred_fallthru
      _
    // Predicated region
    $region38: #{tc_hybrid_forward.1} parent=1 // pred_check
      _
    $region39: #{tc_hybrid_forward.1} parent=1 // pred_check_branch
      %81 = sbr.rel (0) target = $region41
    $region40: #{tc_hybrid_forward.1} parent=1 // pred_region
      %s83 = ssub.s32 2048, 2048
      %84 = vsyncadd [#allocation9], %s83
      %s85 = sshll.u32 [#allocation10], 4
      %s86 = int_to_ptr.vmem [resolvable:$true] %s85
      %91 = dma.hbm_to_vmem [thread:$0]  %s9, 2048, %s86, [#allocation9], 128, 128, 8
    $region41: #{tc_hybrid_forward.1} parent=1 // pred_fallthru
      _
    // Predicated region
    $region42: #{tc_hybrid_forward.1} parent=1 // pred_check
      _
    $region43: #{tc_hybrid_forward.1} parent=1 // pred_check_branch
      %93 = sbr.rel (0) target = $region45
    $region44: #{tc_hybrid_forward.1} parent=1 // pred_region
      _
    $region45: #{tc_hybrid_forward.1} parent=1 // pred_fallthru
      _
    // Predicated region
    $region46: #{tc_hybrid_forward.1} parent=1 // pred_check
      _
    $region47: #{tc_hybrid_forward.1} parent=1 // pred_check_branch
      %95 = sbr.rel (0) target = $region49
    $region48: #{tc_hybrid_forward.1} parent=1 // pred_region
      %s97 = ssub.s32 2048, 2048
      %98 = vsyncadd [#allocation12], %s97
      %s99 = sshll.u32 [#allocation11], 4
      %s100 = int_to_ptr.vmem [resolvable:$true] %s99
      %105 = dma.hbm_to_vmem [thread:$0]  %s11, 2048, %s100, [#allocation12], 128, 128, 8
    $region49: #{tc_hybrid_forward.1} parent=1 // pred_fallthru
      _
    // Predicated region
    $region50: #{tc_hybrid_forward.1} parent=1 // pred_check
      _
    $region51: #{tc_hybrid_forward.1} parent=1 // pred_check_branch
      %107 = sbr.rel (0) target = $region53
    $region52: #{tc_hybrid_forward.1} parent=1 // pred_region
      _
    $region53: #{tc_hybrid_forward.1} parent=1 // pred_fallthru
      _
    // Predicated region
    $region54: #{tc_hybrid_forward.1} parent=1 // pred_check
      _
    $region55: #{tc_hybrid_forward.1} parent=1 // pred_check_branch
      %109 = sbr.rel (0) target = $region57
    $region56: #{tc_hybrid_forward.1} parent=1 // pred_region
      %110 = dma.done [#allocation4], 4096
    $region57: #{tc_hybrid_forward.1} parent=1 // pred_fallthru
      _
    // Predicated region
    $region58: #{tc_hybrid_forward.1} parent=1 // pred_check
      _
    $region59: #{tc_hybrid_forward.1} parent=1 // pred_check_branch
      %112 = sbr.rel (0) target = $region61
    $region60: #{tc_hybrid_forward.1} parent=1 // pred_region
      %113 = dma.done [#allocation6], 4096
    $region61: #{tc_hybrid_forward.1} parent=1 // pred_fallthru
      _
    // Predicated region
    $region62: #{tc_hybrid_forward.1} parent=1 // pred_check
      _
    $region63: #{tc_hybrid_forward.1} parent=1 // pred_check_branch
      %115 = sbr.rel (0) target = $region65
    $region64: #{tc_hybrid_forward.1} parent=1 // pred_region
      %116 = dma.done [#allocation6], 6144
    $region65: #{tc_hybrid_forward.1} parent=1 // pred_fallthru
      _
    // Predicated region
    $region66: #{tc_hybrid_forward.1} parent=1 // pred_check
      _
    $region67: #{tc_hybrid_forward.1} parent=1 // pred_check_branch
      %118 = sbr.rel (0) target = $region69
    $region68: #{tc_hybrid_forward.1} parent=1 // pred_region
      %119 = dma.done [#allocation9], 2048
    $region69: #{tc_hybrid_forward.1} parent=1 // pred_fallthru
      _
    // Predicated region
    $region70: #{tc_hybrid_forward.1} parent=1 // pred_check
      _
    $region71: #{tc_hybrid_forward.1} parent=1 // pred_check_branch
      %121 = sbr.rel (0) target = $region73
    $region72: #{tc_hybrid_forward.1} parent=1 // pred_region
      %122 = dma.done [#allocation9], 2048
    $region73: #{tc_hybrid_forward.1} parent=1 // pred_fallthru
      _
    // Predicated region
    $region74: #{tc_hybrid_forward.1} parent=1 // pred_check
      _
    $region75: #{tc_hybrid_forward.1} parent=1 // pred_check_branch
      %124 = sbr.rel (0) target = $region77
    $region76: #{tc_hybrid_forward.1} parent=1 // pred_region
      %125 = dma.done [#allocation12], 2048
    $region77: #{tc_hybrid_forward.1} parent=1 // pred_fallthru
      _
    %p127 = scmp.eq.s32.totalorder 0, 0
    // Predicated region
    $region78: #{tc_hybrid_forward.1} parent=1 // pred_check
      %p128 = pneg %p127
    $region79: #{tc_hybrid_forward.1} parent=1 // pred_check_branch
      %130 = sbr.rel (%p128) target = $region81
    $region80: #{tc_hybrid_forward.1} parent=1 // pred_region
      %131 = vst [vmem:[#allocation2] sm:$0xff] 0.0
      %132 = vst [vmem:[#allocation2 + $0x8] sm:$0xff] 0.0
      %133 = vst [vmem:[#allocation2 + $0x10] sm:$0xff] 0.0
      %134 = vst [vmem:[#allocation2 + $0x18] sm:$0xff] 0.0
    $region81: #{tc_hybrid_forward.1} parent=1 // pred_fallthru
      _
    %v135 = vld [vmem:[#allocation2] sm:$0xff]
    %v136 = vld [vmem:[#allocation2 + $0x8] sm:$0xff]
    %v137 = vld [vmem:[#allocation2 + $0x10] sm:$0xff]
    %v138 = vld [vmem:[#allocation2 + $0x18] sm:$0xff]
    %v139 = vld [vmem:[%s0] sm:$0xf]
    %v140 = vld [vmem:[#allocation3] sm:$0xff]
    %v141 = vld [vmem:[#allocation3 + $0x8] sm:$0xff]
    %v142 = vld [vmem:[#allocation3 + $0x10] sm:$0xff]
    %v143 = vld [vmem:[#allocation3 + $0x18] sm:$0xff]
    %v144 = vld [vmem:[#allocation3 + $0x20] sm:$0xff]
    %v145 = vld [vmem:[#allocation3 + $0x28] sm:$0xff]
    %v146 = vld [vmem:[#allocation3 + $0x30] sm:$0xff]
    %v147 = vld [vmem:[#allocation3 + $0x38] sm:$0xff]
    %v148 = vld [vmem:[#allocation3 + $0x40] sm:$0xff]
    %v149 = vld [vmem:[#allocation3 + $0x48] sm:$0xff]
    %v150 = vld [vmem:[#allocation3 + $0x50] sm:$0xff]
    %v151 = vld [vmem:[#allocation3 + $0x58] sm:$0xff]
    %v152 = vld [vmem:[#allocation3 + $0x60] sm:$0xff]
    %v153 = vld [vmem:[#allocation3 + $0x68] sm:$0xff]
    %v154 = vld [vmem:[#allocation3 + $0x70] sm:$0xff]
    %v155 = vld [vmem:[#allocation3 + $0x78] sm:$0xff]
    %v156 = vld [vmem:[#allocation3 + $0x80] sm:$0xff]
    %v157 = vld [vmem:[#allocation3 + $0x88] sm:$0xff]
    %v158 = vld [vmem:[#allocation3 + $0x90] sm:$0xff]
    %v159 = vld [vmem:[#allocation3 + $0x98] sm:$0xff]
    %v160 = vld [vmem:[#allocation3 + $0xa0] sm:$0xff]
    %v161 = vld [vmem:[#allocation3 + $0xa8] sm:$0xff]
    %v162 = vld [vmem:[#allocation3 + $0xb0] sm:$0xff]
    %v163 = vld [vmem:[#allocation3 + $0xb8] sm:$0xff]
    %v164 = vld [vmem:[#allocation3 + $0xc0] sm:$0xff]
    %v165 = vld [vmem:[#allocation3 + $0xc8] sm:$0xff]
    %v166 = vld [vmem:[#allocation3 + $0xd0] sm:$0xff]
    %v167 = vld [vmem:[#allocation3 + $0xd8] sm:$0xff]
    %v168 = vld [vmem:[#allocation3 + $0xe0] sm:$0xff]
    %v169 = vld [vmem:[#allocation3 + $0xe8] sm:$0xff]
    %v170 = vld [vmem:[#allocation3 + $0xf0] sm:$0xff]
    %v171 = vld [vmem:[#allocation3 + $0xf8] sm:$0xff]
    %v204 = vunpack.c.l.b16 %v140
    %v205 = vunpack.c.h.b16 %v140
    %v206 = vunpack.c.l.b16 %v141
    %v207 = vunpack.c.h.b16 %v141
    %v208 = vunpack.c.l.b16 %v142
    %v209 = vunpack.c.h.b16 %v142
    %v210 = vunpack.c.l.b16 %v143
    %v211 = vunpack.c.h.b16 %v143
    %v212 = vunpack.c.l.b16 %v144
    %v213 = vunpack.c.h.b16 %v144
    %v214 = vunpack.c.l.b16 %v145
    %v215 = vunpack.c.h.b16 %v145
    %v216 = vunpack.c.l.b16 %v146
    %v217 = vunpack.c.h.b16 %v146
    %v218 = vunpack.c.l.b16 %v147
    %v219 = vunpack.c.h.b16 %v147
    %v220 = vunpack.c.l.b16 %v148
    %v221 = vunpack.c.h.b16 %v148
    %v222 = vunpack.c.l.b16 %v149
    %v223 = vunpack.c.h.b16 %v149
    %v224 = vunpack.c.l.b16 %v150
    %v225 = vunpack.c.h.b16 %v150
    %v226 = vunpack.c.l.b16 %v151
    %v227 = vunpack.c.h.b16 %v151
    %v228 = vunpack.c.l.b16 %v152
    %v229 = vunpack.c.h.b16 %v152
    %v230 = vunpack.c.l.b16 %v153
    %v231 = vunpack.c.h.b16 %v153
    %v232 = vunpack.c.l.b16 %v154
    %v233 = vunpack.c.h.b16 %v154
    %v234 = vunpack.c.l.b16 %v155
    %v235 = vunpack.c.h.b16 %v155
    %v236 = vunpack.c.l.b16 %v156
    %v237 = vunpack.c.h.b16 %v156
    %v238 = vunpack.c.l.b16 %v157
    %v239 = vunpack.c.h.b16 %v157
    %v240 = vunpack.c.l.b16 %v158
    %v241 = vunpack.c.h.b16 %v158
    %v242 = vunpack.c.l.b16 %v159
    %v243 = vunpack.c.h.b16 %v159
    %v244 = vunpack.c.l.b16 %v160
    %v245 = vunpack.c.h.b16 %v160
    %v246 = vunpack.c.l.b16 %v161
    %v247 = vunpack.c.h.b16 %v161
    %v248 = vunpack.c.l.b16 %v162
    %v249 = vunpack.c.h.b16 %v162
    %v250 = vunpack.c.l.b16 %v163
    %v251 = vunpack.c.h.b16 %v163
    %v252 = vunpack.c.l.b16 %v164
    %v253 = vunpack.c.h.b16 %v164
    %v254 = vunpack.c.l.b16 %v165
    %v255 = vunpack.c.h.b16 %v165
    %v256 = vunpack.c.l.b16 %v166
    %v257 = vunpack.c.h.b16 %v166
    %v258 = vunpack.c.l.b16 %v167
    %v259 = vunpack.c.h.b16 %v167
    %v260 = vunpack.c.l.b16 %v168
    %v261 = vunpack.c.h.b16 %v168
    %v262 = vunpack.c.l.b16 %v169
    %v263 = vunpack.c.h.b16 %v169
    %v264 = vunpack.c.l.b16 %v170
    %v265 = vunpack.c.h.b16 %v170
    %v266 = vunpack.c.l.b16 %v171
    %v267 = vunpack.c.h.b16 %v171
    %v268 = vpack.c.b16 %v208, %v204
    %v269 = vpack.c.b16 %v209, %v205
    %v270 = vpack.c.b16 %v210, %v206
    %v271 = vpack.c.b16 %v211, %v207
    %v272 = vpack.c.b16 %v216, %v212
    %v273 = vpack.c.b16 %v217, %v213
    %v274 = vpack.c.b16 %v218, %v214
    %v275 = vpack.c.b16 %v219, %v215
    %v276 = vpack.c.b16 %v224, %v220
    %v277 = vpack.c.b16 %v225, %v221
    %v278 = vpack.c.b16 %v226, %v222
    %v279 = vpack.c.b16 %v227, %v223
    %v280 = vpack.c.b16 %v232, %v228
    %v281 = vpack.c.b16 %v233, %v229
    %v282 = vpack.c.b16 %v234, %v230
    %v283 = vpack.c.b16 %v235, %v231
    %v284 = vpack.c.b16 %v240, %v236
    %v285 = vpack.c.b16 %v241, %v237
    %v286 = vpack.c.b16 %v242, %v238
    %v287 = vpack.c.b16 %v243, %v239
    %v288 = vpack.c.b16 %v248, %v244
    %v289 = vpack.c.b16 %v249, %v245
    %v290 = vpack.c.b16 %v250, %v246
    %v291 = vpack.c.b16 %v251, %v247
    %v292 = vpack.c.b16 %v256, %v252
    %v293 = vpack.c.b16 %v257, %v253
    %v294 = vpack.c.b16 %v258, %v254
    %v295 = vpack.c.b16 %v259, %v255
    %v296 = vpack.c.b16 %v264, %v260
    %v297 = vpack.c.b16 %v265, %v261
    %v298 = vpack.c.b16 %v266, %v262
    %v299 = vpack.c.b16 %v267, %v263
    %332 = vmatprep.subr.bf16.mxu0 %v297
    %333 = vmatpush1.bf16.msra.mxu0 %v296
    %334 = vmatprep.subr.bf16.mxu0 %v293
    %335 = vmatpush1.bf16.msra.mxu0 %v292
    %336 = vmatprep.subr.bf16.mxu0 %v289
    %337 = vmatpush1.bf16.msra.mxu0 %v288
    %338 = vmatprep.subr.bf16.mxu0 %v285
    %339 = vmatpush1.bf16.msra.mxu0 %v284
    %340 = vmatprep.subr.bf16.mxu0 %v281
    %341 = vmatpush1.bf16.msra.mxu0 %v280
    %342 = vmatprep.subr.bf16.mxu0 %v277
    %343 = vmatpush1.bf16.msra.mxu0 %v276
    %344 = vmatprep.subr.bf16.mxu0 %v273
    %345 = vmatpush1.bf16.msra.mxu0 %v272
    %346 = vmatprep.subr.bf16.mxu0 %v269
    %347 = vmatpush1.bf16.msra.mxu0 %v268
    %348 = vmatprep.subr.bf16.mxu0 0
    %349 = vmatpush2.bf16.msra.mxu0 0
    %350 = vmatprep.subr.bf16.mxu0 0
    %351 = vmatpush2.bf16.msra.mxu0 0
    %352 = vmatprep.subr.bf16.mxu0 0
    %353 = vmatpush2.bf16.msra.mxu0 0
    %354 = vmatprep.subr.bf16.mxu0 0
    %355 = vmatpush2.bf16.msra.mxu0 0
    %356 = vmatprep.subr.bf16.mxu0 0
    %357 = vmatpush2.bf16.msra.mxu0 0
    %358 = vmatprep.subr.bf16.mxu0 0
    %359 = vmatpush2.bf16.msra.mxu0 0
    %360 = vmatprep.subr.bf16.mxu0 0
    %361 = vmatpush2.bf16.msra.mxu0 0
    %362 = vmatprep.subr.bf16.mxu0 0
    %363 = vmatpush2.bf16.msra.mxu0 0
    %364 = vmatprep.mubr.bf16.mxu0 0
    %365 = vmatmul.mubr.bf16.gmra.mxu0 %v139
    %v366 = vpop.f32.mrf.mxu0
    %v367 = vadd.f32 0.0, %v366
    %v368 = vpop.f32.mrf.mxu0
    %v369 = vadd.f32 0.0, %v368
    %v370 = vpop.f32.mrf.mxu0
    %v371 = vpop.f32.mrf.mxu0
    %372 = vdwg.mxu0
    %373 = vmatprep.subr.bf16.mxu0 %v299
    %374 = vmatpush1.bf16.msra.mxu0 %v298
    %375 = vmatprep.subr.bf16.mxu0 %v295
    %376 = vmatpush1.bf16.msra.mxu0 %v294
    %377 = vmatprep.subr.bf16.mxu0 %v291
    %378 = vmatpush1.bf16.msra.mxu0 %v290
    %379 = vmatprep.subr.bf16.mxu0 %v287
    %380 = vmatpush1.bf16.msra.mxu0 %v286
    %381 = vmatprep.subr.bf16.mxu0 %v283
    %382 = vmatpush1.bf16.msra.mxu0 %v282
    %383 = vmatprep.subr.bf16.mxu0 %v279
    %384 = vmatpush1.bf16.msra.mxu0 %v278
    %385 = vmatprep.subr.bf16.mxu0 %v275
    %386 = vmatpush1.bf16.msra.mxu0 %v274
    %387 = vmatprep.subr.bf16.mxu0 %v271
    %388 = vmatpush1.bf16.msra.mxu0 %v270
    %389 = vmatprep.subr.bf16.mxu0 0
    %390 = vmatpush2.bf16.msra.mxu0 0
    %391 = vmatprep.subr.bf16.mxu0 0
    %392 = vmatpush2.bf16.msra.mxu0 0
    %393 = vmatprep.subr.bf16.mxu0 0
    %394 = vmatpush2.bf16.msra.mxu0 0
    %395 = vmatprep.subr.bf16.mxu0 0
    %396 = vmatpush2.bf16.msra.mxu0 0
    %397 = vmatprep.subr.bf16.mxu0 0
    %398 = vmatpush2.bf16.msra.mxu0 0
    %399 = vmatprep.subr.bf16.mxu0 0
    %400 = vmatpush2.bf16.msra.mxu0 0
    %401 = vmatprep.subr.bf16.mxu0 0
    %402 = vmatpush2.bf16.msra.mxu0 0
    %403 = vmatprep.subr.bf16.mxu0 0
    %404 = vmatpush2.bf16.msra.mxu0 0
    %405 = vmatprep.mubr.bf16.mxu0 0
    %406 = vmatmul.mubr.bf16.gmra.mxu0 %v139
    %v407 = vpop.f32.mrf.mxu0
    %v408 = vadd.f32 0.0, %v407
    %v409 = vpop.f32.mrf.mxu0
    %v410 = vadd.f32 0.0, %v409
    %v411 = vpop.f32.mrf.mxu0
    %v412 = vpop.f32.mrf.mxu0
    %413 = vdwg.mxu0
    %v414 = vadd.f32 %v135, %v367
    %v415 = vadd.f32 %v136, %v369
    %v416 = vadd.f32 %v137, %v408
    %v417 = vadd.f32 %v138, %v410
    %418 = vst [vmem:[#allocation2] sm:$0xff] %v414
    %419 = vst [vmem:[#allocation2 + $0x8] sm:$0xff] %v415
    %420 = vst [vmem:[#allocation2 + $0x10] sm:$0xff] %v416
    %421 = vst [vmem:[#allocation2 + $0x18] sm:$0xff] %v417
    // Predicated region
    $region82: #{tc_hybrid_forward.1} parent=1 // pred_check
      %p422 = pneg %p127
    $region83: #{tc_hybrid_forward.1} parent=1 // pred_check_branch
      %424 = sbr.rel (%p422) target = $region85
    $region84: #{tc_hybrid_forward.1} parent=1 // pred_region
      %v425 = vld [vmem:[#allocation2] sm:$0xff]
      %v426 = vld [vmem:[#allocation2 + $0x8] sm:$0xff]
      %v427 = vld [vmem:[#allocation2 + $0x10] sm:$0xff]
      %v428 = vld [vmem:[#allocation2 + $0x18] sm:$0xff]
      %v429 = vld [vmem:[%s2] sm:$0xf]
      %v431 = vlaneseq
      %v432 = vshrl.u32 %v431, 7
      %v433 = vsub.s32 0, %v432
      %v434 = vrot.slane %v429, %v433
      %v435 = vlaneseq
      %v436 = vshrl.u32 %v435, 7
      %v437 = vsub.s32 1, %v436
      %v438 = vrot.slane %v429, %v437
      %v439 = vlaneseq
      %v440 = vshrl.u32 %v439, 7
      %v441 = vsub.s32 2, %v440
      %v442 = vrot.slane %v429, %v441
      %v443 = vlaneseq
      %v444 = vshrl.u32 %v443, 7
      %v445 = vsub.s32 3, %v444
      %v446 = vrot.slane %v429, %v445
      %v451 = vadd.f32 %v425, %v434
      %v452 = vadd.f32 %v426, %v438
      %v453 = vadd.f32 %v427, %v442
      %v454 = vadd.f32 %v428, %v446
      %v455 = vmax.f32 %v451, 0.0
      %v456 = vmul.f32 %v452, 0.5
      %v457 = vtanh.pop %v456
      %v458 = vadd.f32 %v457, 1.0
      %v459 = vmul.f32 %v458, 0.5
      %v460 = vtanh.pop %v453
      %v461 = vmul.f32 %v454, 0.5
      %v462 = vtanh.pop %v461
      %v463 = vadd.f32 %v462, 1.0
      %v464 = vmul.f32 %v463, 0.5
      %v465 = vmul.f32 %v459, %v460
      %v466 = vtanh.pop %v465
      %v467 = vmul.f32 %v464, %v466
      %v468 = vld [vmem:[#allocation5] sm:$0xff]
      %v469 = vld [vmem:[#allocation5 + $0x8] sm:$0xff]
      %v470 = vld [vmem:[#allocation5 + $0x10] sm:$0xff]
      %v471 = vld [vmem:[#allocation5 + $0x18] sm:$0xff]
      %v472 = vld [vmem:[#allocation5 + $0x20] sm:$0xff]
      %v473 = vld [vmem:[#allocation5 + $0x28] sm:$0xff]
      %v474 = vld [vmem:[#allocation5 + $0x30] sm:$0xff]
      %v475 = vld [vmem:[#allocation5 + $0x38] sm:$0xff]
      %v476 = vld [vmem:[#allocation5 + $0x40] sm:$0xff]
      %v477 = vld [vmem:[#allocation5 + $0x48] sm:$0xff]
      %v478 = vld [vmem:[#allocation5 + $0x50] sm:$0xff]
      %v479 = vld [vmem:[#allocation5 + $0x58] sm:$0xff]
      %v480 = vld [vmem:[#allocation5 + $0x60] sm:$0xff]
      %v481 = vld [vmem:[#allocation5 + $0x68] sm:$0xff]
      %v482 = vld [vmem:[#allocation5 + $0x70] sm:$0xff]
      %v483 = vld [vmem:[#allocation5 + $0x78] sm:$0xff]
      %v484 = vld [vmem:[#allocation5 + $0x80] sm:$0xff]
      %v485 = vld [vmem:[#allocation5 + $0x88] sm:$0xff]
      %v486 = vld [vmem:[#allocation5 + $0x90] sm:$0xff]
      %v487 = vld [vmem:[#allocation5 + $0x98] sm:$0xff]
      %v488 = vld [vmem:[#allocation5 + $0xa0] sm:$0xff]
      %v489 = vld [vmem:[#allocation5 + $0xa8] sm:$0xff]
      %v490 = vld [vmem:[#allocation5 + $0xb0] sm:$0xff]
      %v491 = vld [vmem:[#allocation5 + $0xb8] sm:$0xff]
      %v492 = vld [vmem:[#allocation5 + $0xc0] sm:$0xff]
      %v493 = vld [vmem:[#allocation5 + $0xc8] sm:$0xff]
      %v494 = vld [vmem:[#allocation5 + $0xd0] sm:$0xff]
      %v495 = vld [vmem:[#allocation5 + $0xd8] sm:$0xff]
      %v496 = vld [vmem:[#allocation5 + $0xe0] sm:$0xff]
      %v497 = vld [vmem:[#allocation5 + $0xe8] sm:$0xff]
      %v498 = vld [vmem:[#allocation5 + $0xf0] sm:$0xff]
      %v499 = vld [vmem:[#allocation5 + $0xf8] sm:$0xff]
      %v500 = vld [vmem:[%s4] sm:$0x3]
      %v502 = vlaneseq
      %v503 = vshrl.u32 %v502, 7
      %v504 = vsub.s32 0, %v503
      %v505 = vrot.slane %v500, %v504
      %v506 = vlaneseq
      %v507 = vshrl.u32 %v506, 7
      %v508 = vsub.s32 1, %v507
      %v509 = vrot.slane %v500, %v508
      %512 = vmatprep.subr.mxu0 %v499
      %513 = vmatpush1.msra.mxu0 %v498
      %514 = vmatprep.subr.mxu0 %v497
      %515 = vmatpush1.msra.mxu0 %v496
      %516 = vmatprep.subr.mxu0 %v495
      %517 = vmatpush1.msra.mxu0 %v494
      %518 = vmatprep.subr.mxu0 %v493
      %519 = vmatpush1.msra.mxu0 %v492
      %520 = vmatprep.subr.mxu0 %v491
      %521 = vmatpush1.msra.mxu0 %v490
      %522 = vmatprep.subr.mxu0 %v489
      %523 = vmatpush1.msra.mxu0 %v488
      %524 = vmatprep.subr.mxu0 %v487
      %525 = vmatpush1.msra.mxu0 %v486
      %526 = vmatprep.subr.mxu0 %v485
      %527 = vmatpush1.msra.mxu0 %v484
      %528 = vmatprep.subr.mxu0 %v483
      %529 = vmatpush1.msra.mxu0 %v482
      %530 = vmatprep.subr.mxu0 %v481
      %531 = vmatpush1.msra.mxu0 %v480
      %532 = vmatprep.subr.mxu0 %v479
      %533 = vmatpush1.msra.mxu0 %v478
      %534 = vmatprep.subr.mxu0 %v477
      %535 = vmatpush1.msra.mxu0 %v476
      %536 = vmatprep.subr.mxu0 %v475
      %537 = vmatpush1.msra.mxu0 %v474
      %538 = vmatprep.subr.mxu0 %v473
      %539 = vmatpush1.msra.mxu0 %v472
      %540 = vmatprep.subr.mxu0 %v471
      %541 = vmatpush1.msra.mxu0 %v470
      %542 = vmatprep.subr.mxu0 %v469
      %543 = vmatpush1.msra.mxu0 %v468
      %544 = vmatprep.subr.mxu0 0.0
      %545 = vmatpush2.msra.mxu0 0.0
      %546 = vmatprep.subr.mxu0 0.0
      %547 = vmatpush2.msra.mxu0 0.0
      %548 = vmatprep.subr.mxu0 0.0
      %549 = vmatpush2.msra.mxu0 0.0
      %550 = vmatprep.subr.mxu0 0.0
      %551 = vmatpush2.msra.mxu0 0.0
      %552 = vmatprep.subr.mxu0 0.0
      %553 = vmatpush2.msra.mxu0 0.0
      %554 = vmatprep.subr.mxu0 0.0
      %555 = vmatpush2.msra.mxu0 0.0
      %556 = vmatprep.subr.mxu0 0.0
      %557 = vmatpush2.msra.mxu0 0.0
      %558 = vmatprep.subr.mxu0 0.0
      %559 = vmatpush2.msra.mxu0 0.0
      %560 = vmatprep.subr.mxu0 0.0
      %561 = vmatpush2.msra.mxu0 0.0
      %562 = vmatprep.subr.mxu0 0.0
      %563 = vmatpush2.msra.mxu0 0.0
      %564 = vmatprep.subr.mxu0 0.0
      %565 = vmatpush2.msra.mxu0 0.0
      %566 = vmatprep.subr.mxu0 0.0
      %567 = vmatpush2.msra.mxu0 0.0
      %568 = vmatprep.subr.mxu0 0.0
      %569 = vmatpush2.msra.mxu0 0.0
      %570 = vmatprep.subr.mxu0 0.0
      %571 = vmatpush2.msra.mxu0 0.0
      %572 = vmatprep.subr.mxu0 0.0
      %573 = vmatpush2.msra.mxu0 0.0
      %574 = vmatprep.subr.mxu0 0.0
      %575 = vmatpush2.msra.mxu0 0.0
      %576 = vmatprep.mubr.f32.mxu0 0.0
      %577 = vmatmul.mubr.f32.gmra.mxu0 %v455
      %v578 = vpop.f32.mrf.mxu0
      %v579 = vadd.f32 %v505, %v578
      %v580 = vpop.f32.mrf.mxu0
      %v581 = vadd.f32 %v509, %v580
      %582 = vdwg.mxu0
      %v583 = vmul.f32 %v581, 0.5
      %v584 = vtanh.pop %v583
      %v585 = vadd.f32 %v584, 1.0
      %v586 = vmul.f32 %v585, 0.5
      %v587 = vld [vmem:[#allocation7] sm:$0xff]
      %v588 = vld [vmem:[#allocation7 + $0x8] sm:$0xff]
      %v589 = vld [vmem:[#allocation7 + $0x10] sm:$0xff]
      %v590 = vld [vmem:[#allocation7 + $0x18] sm:$0xff]
      %v591 = vld [vmem:[#allocation7 + $0x20] sm:$0xff]
      %v592 = vld [vmem:[#allocation7 + $0x28] sm:$0xff]
      %v593 = vld [vmem:[#allocation7 + $0x30] sm:$0xff]
      %v594 = vld [vmem:[#allocation7 + $0x38] sm:$0xff]
      %v595 = vld [vmem:[#allocation7 + $0x40] sm:$0xff]
      %v596 = vld [vmem:[#allocation7 + $0x48] sm:$0xff]
      %v597 = vld [vmem:[#allocation7 + $0x50] sm:$0xff]
      %v598 = vld [vmem:[#allocation7 + $0x58] sm:$0xff]
      %v599 = vld [vmem:[#allocation7 + $0x60] sm:$0xff]
      %v600 = vld [vmem:[#allocation7 + $0x68] sm:$0xff]
      %v601 = vld [vmem:[#allocation7 + $0x70] sm:$0xff]
      %v602 = vld [vmem:[#allocation7 + $0x78] sm:$0xff]
      %v603 = vld [vmem:[#allocation7 + $0x80] sm:$0xff]
      %v604 = vld [vmem:[#allocation7 + $0x88] sm:$0xff]
      %v605 = vld [vmem:[#allocation7 + $0x90] sm:$0xff]
      %v606 = vld [vmem:[#allocation7 + $0x98] sm:$0xff]
      %v607 = vld [vmem:[#allocation7 + $0xa0] sm:$0xff]
      %v608 = vld [vmem:[#allocation7 + $0xa8] sm:$0xff]
      %v609 = vld [vmem:[#allocation7 + $0xb0] sm:$0xff]
      %v610 = vld [vmem:[#allocation7 + $0xb8] sm:$0xff]
      %v611 = vld [vmem:[#allocation7 + $0xc0] sm:$0xff]
      %v612 = vld [vmem:[#allocation7 + $0xc8] sm:$0xff]
      %v613 = vld [vmem:[#allocation7 + $0xd0] sm:$0xff]
      %v614 = vld [vmem:[#allocation7 + $0xd8] sm:$0xff]
      %v615 = vld [vmem:[#allocation7 + $0xe0] sm:$0xff]
      %v616 = vld [vmem:[#allocation7 + $0xe8] sm:$0xff]
      %v617 = vld [vmem:[#allocation7 + $0xf0] sm:$0xff]
      %v618 = vld [vmem:[#allocation7 + $0xf8] sm:$0xff]
      %v619 = vld [vmem:[#allocation7 + $0x100] sm:$0xff]
      %v620 = vld [vmem:[#allocation7 + $0x108] sm:$0xff]
      %v621 = vld [vmem:[#allocation7 + $0x110] sm:$0xff]
      %v622 = vld [vmem:[#allocation7 + $0x118] sm:$0xff]
      %v623 = vld [vmem:[#allocation7 + $0x120] sm:$0xff]
      %v624 = vld [vmem:[#allocation7 + $0x128] sm:$0xff]
      %v625 = vld [vmem:[#allocation7 + $0x130] sm:$0xff]
      %v626 = vld [vmem:[#allocation7 + $0x138] sm:$0xff]
      %v627 = vld [vmem:[#allocation7 + $0x140] sm:$0xff]
      %v628 = vld [vmem:[#allocation7 + $0x148] sm:$0xff]
      %v629 = vld [vmem:[#allocation7 + $0x150] sm:$0xff]
      %v630 = vld [vmem:[#allocation7 + $0x158] sm:$0xff]
      %v631 = vld [vmem:[#allocation7 + $0x160] sm:$0xff]
      %v632 = vld [vmem:[#allocation7 + $0x168] sm:$0xff]
      %v633 = vld [vmem:[#allocation7 + $0x170] sm:$0xff]
      %v634 = vld [vmem:[#allocation7 + $0x178] sm:$0xff]
      %v635 = vld [vmem:[%s6] sm:$0x7]
      %v637 = vlaneseq
      %v638 = vshrl.u32 %v637, 7
      %v639 = vsub.s32 0, %v638
      %v640 = vrot.slane %v635, %v639
      %v641 = vlaneseq
      %v642 = vshrl.u32 %v641, 7
      %v643 = vsub.s32 1, %v642
      %v644 = vrot.slane %v635, %v643
      %v645 = vlaneseq
      %v646 = vshrl.u32 %v645, 7
      %v647 = vsub.s32 2, %v646
      %v648 = vrot.slane %v635, %v647
      %652 = vmatprep.subr.mxu0 %v633
      %653 = vmatpush1.msra.mxu0 %v632
      %654 = vmatprep.subr.mxu0 %v630
      %655 = vmatpush1.msra.mxu0 %v629
      %656 = vmatprep.subr.mxu0 %v627
      %657 = vmatpush1.msra.mxu0 %v626
      %658 = vmatprep.subr.mxu0 %v624
      %659 = vmatpush1.msra.mxu0 %v623
      %660 = vmatprep.subr.mxu0 %v621
      %661 = vmatpush1.msra.mxu0 %v620
      %662 = vmatprep.subr.mxu0 %v618
      %663 = vmatpush1.msra.mxu0 %v617
      %664 = vmatprep.subr.mxu0 %v615
      %665 = vmatpush1.msra.mxu0 %v614
      %666 = vmatprep.subr.mxu0 %v612
      %667 = vmatpush1.msra.mxu0 %v611
      %668 = vmatprep.subr.mxu0 %v609
      %669 = vmatpush1.msra.mxu0 %v608
      %670 = vmatprep.subr.mxu0 %v606
      %671 = vmatpush1.msra.mxu0 %v605
      %672 = vmatprep.subr.mxu0 %v603
      %673 = vmatpush1.msra.mxu0 %v602
      %674 = vmatprep.subr.mxu0 %v600
      %675 = vmatpush1.msra.mxu0 %v599
      %676 = vmatprep.subr.mxu0 %v597
      %677 = vmatpush1.msra.mxu0 %v596
      %678 = vmatprep.subr.mxu0 %v594
      %679 = vmatpush1.msra.mxu0 %v593
      %680 = vmatprep.subr.mxu0 %v591
      %681 = vmatpush1.msra.mxu0 %v590
      %682 = vmatprep.subr.mxu0 %v588
      %683 = vmatpush1.msra.mxu0 %v587
      %684 = vmatprep.subr.mxu0 0.0
      %685 = vmatpush2.msra.mxu0 0.0
      %686 = vmatprep.subr.mxu0 0.0
      %687 = vmatpush2.msra.mxu0 0.0
      %688 = vmatprep.subr.mxu0 0.0
      %689 = vmatpush2.msra.mxu0 0.0
      %690 = vmatprep.subr.mxu0 0.0
      %691 = vmatpush2.msra.mxu0 0.0
      %692 = vmatprep.subr.mxu0 0.0
      %693 = vmatpush2.msra.mxu0 0.0
      %694 = vmatprep.subr.mxu0 0.0
      %695 = vmatpush2.msra.mxu0 0.0
      %696 = vmatprep.subr.mxu0 0.0
      %697 = vmatpush2.msra.mxu0 0.0
      %698 = vmatprep.subr.mxu0 0.0
      %699 = vmatpush2.msra.mxu0 0.0
      %700 = vmatprep.subr.mxu0 0.0
      %701 = vmatpush2.msra.mxu0 0.0
      %702 = vmatprep.subr.mxu0 0.0
      %703 = vmatpush2.msra.mxu0 0.0
      %704 = vmatprep.subr.mxu0 0.0
      %705 = vmatpush2.msra.mxu0 0.0
      %706 = vmatprep.subr.mxu0 0.0
      %707 = vmatpush2.msra.mxu0 0.0
      %708 = vmatprep.subr.mxu0 0.0
      %709 = vmatpush2.msra.mxu0 0.0
      %710 = vmatprep.subr.mxu0 0.0
      %711 = vmatpush2.msra.mxu0 0.0
      %712 = vmatprep.subr.mxu0 0.0
      %713 = vmatpush2.msra.mxu0 0.0
      %714 = vmatprep.subr.mxu0 0.0
      %715 = vmatpush2.msra.mxu0 0.0
      %716 = vmatprep.mubr.f32.mxu0 0.0
      %717 = vmatmul.mubr.f32.gmra.mxu0 %v467
      %v718 = vpop.f32.mrf.mxu0
      %v719 = vadd.f32 %v640, %v718
      %v720 = vpop.f32.mrf.mxu0
      %v721 = vadd.f32 %v644, %v720
      %722 = vdwg.mxu0
      %723 = vmatprep.subr.mxu0 0.0
      %724 = vmatpush1.msra.mxu0 %v634
      %725 = vmatprep.subr.mxu0 0.0
      %726 = vmatpush1.msra.mxu0 %v631
      %727 = vmatprep.subr.mxu0 0.0
      %728 = vmatpush1.msra.mxu0 %v628
      %729 = vmatprep.subr.mxu0 0.0
      %730 = vmatpush1.msra.mxu0 %v625
      %731 = vmatprep.subr.mxu0 0.0
      %732 = vmatpush1.msra.mxu0 %v622
      %733 = vmatprep.subr.mxu0 0.0
      %734 = vmatpush1.msra.mxu0 %v619
      %735 = vmatprep.subr.mxu0 0.0
      %736 = vmatpush1.msra.mxu0 %v616
      %737 = vmatprep.subr.mxu0 0.0
      %738 = vmatpush1.msra.mxu0 %v613
      %739 = vmatprep.subr.mxu0 0.0
      %740 = vmatpush1.msra.mxu0 %v610
      %741 = vmatprep.subr.mxu0 0.0
      %742 = vmatpush1.msra.mxu0 %v607
      %743 = vmatprep.subr.mxu0 0.0
      %744 = vmatpush1.msra.mxu0 %v604
      %745 = vmatprep.subr.mxu0 0.0
      %746 = vmatpush1.msra.mxu0 %v601
      %747 = vmatprep.subr.mxu0 0.0
      %748 = vmatpush1.msra.mxu0 %v598
      %749 = vmatprep.subr.mxu0 0.0
      %750 = vmatpush1.msra.mxu0 %v595
      %751 = vmatprep.subr.mxu0 0.0
      %752 = vmatpush1.msra.mxu0 %v592
      %753 = vmatprep.subr.mxu0 0.0
      %754 = vmatpush1.msra.mxu0 %v589
      %755 = vmatprep.subr.mxu0 0.0
      %756 = vmatpush2.msra.mxu0 0.0
      %757 = vmatprep.subr.mxu0 0.0
      %758 = vmatpush2.msra.mxu0 0.0
      %759 = vmatprep.subr.mxu0 0.0
      %760 = vmatpush2.msra.mxu0 0.0
      %761 = vmatprep.subr.mxu0 0.0
      %762 = vmatpush2.msra.mxu0 0.0
      %763 = vmatprep.subr.mxu0 0.0
      %764 = vmatpush2.msra.mxu0 0.0
      %765 = vmatprep.subr.mxu0 0.0
      %766 = vmatpush2.msra.mxu0 0.0
      %767 = vmatprep.subr.mxu0 0.0
      %768 = vmatpush2.msra.mxu0 0.0
      %769 = vmatprep.subr.mxu0 0.0
      %770 = vmatpush2.msra.mxu0 0.0
      %771 = vmatprep.subr.mxu0 0.0
      %772 = vmatpush2.msra.mxu0 0.0
      %773 = vmatprep.subr.mxu0 0.0
      %774 = vmatpush2.msra.mxu0 0.0
      %775 = vmatprep.subr.mxu0 0.0
      %776 = vmatpush2.msra.mxu0 0.0
      %777 = vmatprep.subr.mxu0 0.0
      %778 = vmatpush2.msra.mxu0 0.0
      %779 = vmatprep.subr.mxu0 0.0
      %780 = vmatpush2.msra.mxu0 0.0
      %781 = vmatprep.subr.mxu0 0.0
      %782 = vmatpush2.msra.mxu0 0.0
      %783 = vmatprep.subr.mxu0 0.0
      %784 = vmatpush2.msra.mxu0 0.0
      %785 = vmatprep.subr.mxu0 0.0
      %786 = vmatpush2.msra.mxu0 0.0
      %787 = vmatprep.mubr.f32.mxu0 0.0
      %788 = vmatmul.mubr.f32.gmra.mxu0 %v467
      %v789 = vpop.f32.mrf.mxu0
      %v790 = vadd.f32 %v648, %v789
      %v791 = vpop.f32.mrf.mxu0
      %792 = vdwg.mxu0
      %v793 = vmul.f32 %v719, 0.5
      %v794 = vtanh.pop %v793
      %v795 = vadd.f32 %v794, 1.0
      %v796 = vmul.f32 %v795, 0.5
      %v797 = vtanh.pop %v721
      %v798 = vmul.f32 %v790, 0.5
      %v799 = vtanh.pop %v798
      %v800 = vadd.f32 %v799, 1.0
      %v801 = vmul.f32 %v800, 0.5
      %v802 = vmul.f32 %v796, %v797
      %v803 = vtanh.pop %v802
      %v804 = vmul.f32 %v801, %v803
      %v805 = vld [vmem:[#allocation8] sm:$0xff]
      %v806 = vld [vmem:[#allocation8 + $0x8] sm:$0xff]
      %v807 = vld [vmem:[#allocation8 + $0x10] sm:$0xff]
      %v808 = vld [vmem:[#allocation8 + $0x18] sm:$0xff]
      %v809 = vld [vmem:[#allocation8 + $0x20] sm:$0xff]
      %v810 = vld [vmem:[#allocation8 + $0x28] sm:$0xff]
      %v811 = vld [vmem:[#allocation8 + $0x30] sm:$0xff]
      %v812 = vld [vmem:[#allocation8 + $0x38] sm:$0xff]
      %v813 = vld [vmem:[#allocation8 + $0x40] sm:$0xff]
      %v814 = vld [vmem:[#allocation8 + $0x48] sm:$0xff]
      %v815 = vld [vmem:[#allocation8 + $0x50] sm:$0xff]
      %v816 = vld [vmem:[#allocation8 + $0x58] sm:$0xff]
      %v817 = vld [vmem:[#allocation8 + $0x60] sm:$0xff]
      %v818 = vld [vmem:[#allocation8 + $0x68] sm:$0xff]
      %v819 = vld [vmem:[#allocation8 + $0x70] sm:$0xff]
      %v820 = vld [vmem:[#allocation8 + $0x78] sm:$0xff]
      %v821 = vld [vmem:[%s8] sm:$0x1]
      %v823 = vlaneseq
      %v824 = vshrl.u32 %v823, 7
      %v825 = vsub.s32 0, %v824
      %v826 = vrot.slane %v821, %v825
      %828 = vmatprep.subr.mxu0 0.0
      %829 = vmatpush1.msra.mxu0 %v820
      %830 = vmatprep.subr.mxu0 0.0
      %831 = vmatpush1.msra.mxu0 %v819
      %832 = vmatprep.subr.mxu0 0.0
      %833 = vmatpush1.msra.mxu0 %v818
      %834 = vmatprep.subr.mxu0 0.0
      %835 = vmatpush1.msra.mxu0 %v817
      %836 = vmatprep.subr.mxu0 0.0
      %837 = vmatpush1.msra.mxu0 %v816
      %838 = vmatprep.subr.mxu0 0.0
      %839 = vmatpush1.msra.mxu0 %v815
      %840 = vmatprep.subr.mxu0 0.0
      %841 = vmatpush1.msra.mxu0 %v814
      %842 = vmatprep.subr.mxu0 0.0
      %843 = vmatpush1.msra.mxu0 %v813
      %844 = vmatprep.subr.mxu0 0.0
      %845 = vmatpush1.msra.mxu0 %v812
      %846 = vmatprep.subr.mxu0 0.0
      %847 = vmatpush1.msra.mxu0 %v811
      %848 = vmatprep.subr.mxu0 0.0
      %849 = vmatpush1.msra.mxu0 %v810
      %850 = vmatprep.subr.mxu0 0.0
      %851 = vmatpush1.msra.mxu0 %v809
      %852 = vmatprep.subr.mxu0 0.0
      %853 = vmatpush1.msra.mxu0 %v808
      %854 = vmatprep.subr.mxu0 0.0
      %855 = vmatpush1.msra.mxu0 %v807
      %856 = vmatprep.subr.mxu0 0.0
      %857 = vmatpush1.msra.mxu0 %v806
      %858 = vmatprep.subr.mxu0 0.0
      %859 = vmatpush1.msra.mxu0 %v805
      %860 = vmatprep.subr.mxu0 0.0
      %861 = vmatpush2.msra.mxu0 0.0
      %862 = vmatprep.subr.mxu0 0.0
      %863 = vmatpush2.msra.mxu0 0.0
      %864 = vmatprep.subr.mxu0 0.0
      %865 = vmatpush2.msra.mxu0 0.0
      %866 = vmatprep.subr.mxu0 0.0
      %867 = vmatpush2.msra.mxu0 0.0
      %868 = vmatprep.subr.mxu0 0.0
      %869 = vmatpush2.msra.mxu0 0.0
      %870 = vmatprep.subr.mxu0 0.0
      %871 = vmatpush2.msra.mxu0 0.0
      %872 = vmatprep.subr.mxu0 0.0
      %873 = vmatpush2.msra.mxu0 0.0
      %874 = vmatprep.subr.mxu0 0.0
      %875 = vmatpush2.msra.mxu0 0.0
      %876 = vmatprep.subr.mxu0 0.0
      %877 = vmatpush2.msra.mxu0 0.0
      %878 = vmatprep.subr.mxu0 0.0
      %879 = vmatpush2.msra.mxu0 0.0
      %880 = vmatprep.subr.mxu0 0.0
      %881 = vmatpush2.msra.mxu0 0.0
      %882 = vmatprep.subr.mxu0 0.0
      %883 = vmatpush2.msra.mxu0 0.0
      %884 = vmatprep.subr.mxu0 0.0
      %885 = vmatpush2.msra.mxu0 0.0
      %886 = vmatprep.subr.mxu0 0.0
      %887 = vmatpush2.msra.mxu0 0.0
      %888 = vmatprep.subr.mxu0 0.0
      %889 = vmatpush2.msra.mxu0 0.0
      %890 = vmatprep.subr.mxu0 0.0
      %891 = vmatpush2.msra.mxu0 0.0
      %892 = vmatprep.mubr.f32.mxu0 0.0
      %893 = vmatmul.mubr.f32.gmra.mxu0 %v804
      %v894 = vpop.f32.mrf.mxu0
      %v895 = vadd.f32 %v826, %v894
      %v896 = vpop.f32.mrf.mxu0
      %897 = vdwg.mxu0
      %v898 = vmul.f32 %v895, 0.5
      %v899 = vtanh.pop %v898
      %v900 = vadd.f32 %v899, 1.0
      %v901 = vmul.f32 %v900, 0.5
      %903 = vset.pattern.permute.xlu0 0
      %904 = vperm.xlu0 %903, %v586
      %v905 = vpop.permute.xlu0 %904
      %v907 = vmul.f32 %v905, %v579
      %909 = vset.pattern.permute.xlu0 0
      %910 = vperm.xlu0 %909, %v901
      %v911 = vpop.permute.xlu0 %910
      %v913 = vmul.f32 %v911, %v804
      %v914 = vadd.f32 %v907, %v913
      %v915 = vld [vmem:[#allocation10] sm:$0xff]
      %v916 = vld [vmem:[#allocation10 + $0x8] sm:$0xff]
      %v917 = vld [vmem:[#allocation10 + $0x10] sm:$0xff]
      %v918 = vld [vmem:[#allocation10 + $0x18] sm:$0xff]
      %v919 = vld [vmem:[#allocation10 + $0x20] sm:$0xff]
      %v920 = vld [vmem:[#allocation10 + $0x28] sm:$0xff]
      %v921 = vld [vmem:[#allocation10 + $0x30] sm:$0xff]
      %v922 = vld [vmem:[#allocation10 + $0x38] sm:$0xff]
      %v923 = vld [vmem:[#allocation10 + $0x40] sm:$0xff]
      %v924 = vld [vmem:[#allocation10 + $0x48] sm:$0xff]
      %v925 = vld [vmem:[#allocation10 + $0x50] sm:$0xff]
      %v926 = vld [vmem:[#allocation10 + $0x58] sm:$0xff]
      %v927 = vld [vmem:[#allocation10 + $0x60] sm:$0xff]
      %v928 = vld [vmem:[#allocation10 + $0x68] sm:$0xff]
      %v929 = vld [vmem:[#allocation10 + $0x70] sm:$0xff]
      %v930 = vld [vmem:[#allocation10 + $0x78] sm:$0xff]
      %v931 = vld [vmem:[%s10] sm:$0x1]
      %v933 = vlaneseq
      %v934 = vshrl.u32 %v933, 7
      %v935 = vsub.s32 0, %v934
      %v936 = vrot.slane %v931, %v935
      %938 = vmatprep.subr.mxu0 0.0
      %939 = vmatpush1.msra.mxu0 %v930
      %940 = vmatprep.subr.mxu0 0.0
      %941 = vmatpush1.msra.mxu0 %v929
      %942 = vmatprep.subr.mxu0 0.0
      %943 = vmatpush1.msra.mxu0 %v928
      %944 = vmatprep.subr.mxu0 0.0
      %945 = vmatpush1.msra.mxu0 %v927
      %946 = vmatprep.subr.mxu0 0.0
      %947 = vmatpush1.msra.mxu0 %v926
      %948 = vmatprep.subr.mxu0 0.0
      %949 = vmatpush1.msra.mxu0 %v925
      %950 = vmatprep.subr.mxu0 0.0
      %951 = vmatpush1.msra.mxu0 %v924
      %952 = vmatprep.subr.mxu0 0.0
      %953 = vmatpush1.msra.mxu0 %v923
      %954 = vmatprep.subr.mxu0 0.0
      %955 = vmatpush1.msra.mxu0 %v922
      %956 = vmatprep.subr.mxu0 0.0
      %957 = vmatpush1.msra.mxu0 %v921
      %958 = vmatprep.subr.mxu0 0.0
      %959 = vmatpush1.msra.mxu0 %v920
      %960 = vmatprep.subr.mxu0 0.0
      %961 = vmatpush1.msra.mxu0 %v919
      %962 = vmatprep.subr.mxu0 0.0
      %963 = vmatpush1.msra.mxu0 %v918
      %964 = vmatprep.subr.mxu0 0.0
      %965 = vmatpush1.msra.mxu0 %v917
      %966 = vmatprep.subr.mxu0 0.0
      %967 = vmatpush1.msra.mxu0 %v916
      %968 = vmatprep.subr.mxu0 0.0
      %969 = vmatpush1.msra.mxu0 %v915
      %970 = vmatprep.subr.mxu0 0.0
      %971 = vmatpush2.msra.mxu0 0.0
      %972 = vmatprep.subr.mxu0 0.0
      %973 = vmatpush2.msra.mxu0 0.0
      %974 = vmatprep.subr.mxu0 0.0
      %975 = vmatpush2.msra.mxu0 0.0
      %976 = vmatprep.subr.mxu0 0.0
      %977 = vmatpush2.msra.mxu0 0.0
      %978 = vmatprep.subr.mxu0 0.0
      %979 = vmatpush2.msra.mxu0 0.0
      %980 = vmatprep.subr.mxu0 0.0
      %981 = vmatpush2.msra.mxu0 0.0
      %982 = vmatprep.subr.mxu0 0.0
      %983 = vmatpush2.msra.mxu0 0.0
      %984 = vmatprep.subr.mxu0 0.0
      %985 = vmatpush2.msra.mxu0 0.0
      %986 = vmatprep.subr.mxu0 0.0
      %987 = vmatpush2.msra.mxu0 0.0
      %988 = vmatprep.subr.mxu0 0.0
      %989 = vmatpush2.msra.mxu0 0.0
      %990 = vmatprep.subr.mxu0 0.0
      %991 = vmatpush2.msra.mxu0 0.0
      %992 = vmatprep.subr.mxu0 0.0
      %993 = vmatpush2.msra.mxu0 0.0
      %994 = vmatprep.subr.mxu0 0.0
      %995 = vmatpush2.msra.mxu0 0.0
      %996 = vmatprep.subr.mxu0 0.0
      %997 = vmatpush2.msra.mxu0 0.0
      %998 = vmatprep.subr.mxu0 0.0
      %999 = vmatpush2.msra.mxu0 0.0
      %1000 = vmatprep.subr.mxu0 0.0
      %1001 = vmatpush2.msra.mxu0 0.0
      %1002 = vmatprep.mubr.f32.mxu0 0.0
      %1003 = vmatmul.mubr.f32.gmra.mxu0 %v914
      %v1004 = vpop.f32.mrf.mxu0
      %v1005 = vadd.f32 %v936, %v1004
      %v1006 = vpop.f32.mrf.mxu0
      %1007 = vdwg.mxu0
      %v1008 = vmax.f32 %v1005, 0.0
      %v1009 = vld [vmem:[#allocation11] sm:$0xff]
      %v1010 = vld [vmem:[#allocation11 + $0x8] sm:$0xff]
      %v1011 = vld [vmem:[#allocation11 + $0x10] sm:$0xff]
      %v1012 = vld [vmem:[#allocation11 + $0x18] sm:$0xff]
      %v1013 = vld [vmem:[#allocation11 + $0x20] sm:$0xff]
      %v1014 = vld [vmem:[#allocation11 + $0x28] sm:$0xff]
      %v1015 = vld [vmem:[#allocation11 + $0x30] sm:$0xff]
      %v1016 = vld [vmem:[#allocation11 + $0x38] sm:$0xff]
      %v1017 = vld [vmem:[#allocation11 + $0x40] sm:$0xff]
      %v1018 = vld [vmem:[#allocation11 + $0x48] sm:$0xff]
      %v1019 = vld [vmem:[#allocation11 + $0x50] sm:$0xff]
      %v1020 = vld [vmem:[#allocation11 + $0x58] sm:$0xff]
      %v1021 = vld [vmem:[#allocation11 + $0x60] sm:$0xff]
      %v1022 = vld [vmem:[#allocation11 + $0x68] sm:$0xff]
      %v1023 = vld [vmem:[#allocation11 + $0x70] sm:$0xff]
      %v1024 = vld [vmem:[#allocation11 + $0x78] sm:$0xff]
      %v1025 = vld [vmem:[%s12] sm:$0x1]
      %v1027 = vlaneseq
      %v1028 = vshrl.u32 %v1027, 7
      %v1029 = vsub.s32 0, %v1028
      %v1030 = vrot.slane %v1025, %v1029
      %1032 = vmatprep.subr.mxu0 0.0
      %1033 = vmatpush1.msra.mxu0 %v1024
      %1034 = vmatprep.subr.mxu0 0.0
      %1035 = vmatpush1.msra.mxu0 %v1023
      %1036 = vmatprep.subr.mxu0 0.0
      %1037 = vmatpush1.msra.mxu0 %v1022
      %1038 = vmatprep.subr.mxu0 0.0
      %1039 = vmatpush1.msra.mxu0 %v1021
      %1040 = vmatprep.subr.mxu0 0.0
      %1041 = vmatpush1.msra.mxu0 %v1020
      %1042 = vmatprep.subr.mxu0 0.0
      %1043 = vmatpush1.msra.mxu0 %v1019
      %1044 = vmatprep.subr.mxu0 0.0
      %1045 = vmatpush1.msra.mxu0 %v1018
      %1046 = vmatprep.subr.mxu0 0.0
      %1047 = vmatpush1.msra.mxu0 %v1017
      %1048 = vmatprep.subr.mxu0 0.0
      %1049 = vmatpush1.msra.mxu0 %v1016
      %1050 = vmatprep.subr.mxu0 0.0
      %1051 = vmatpush1.msra.mxu0 %v1015
      %1052 = vmatprep.subr.mxu0 0.0
      %1053 = vmatpush1.msra.mxu0 %v1014
      %1054 = vmatprep.subr.mxu0 0.0
      %1055 = vmatpush1.msra.mxu0 %v1013
      %1056 = vmatprep.subr.mxu0 0.0
      %1057 = vmatpush1.msra.mxu0 %v1012
      %1058 = vmatprep.subr.mxu0 0.0
      %1059 = vmatpush1.msra.mxu0 %v1011
      %1060 = vmatprep.subr.mxu0 0.0
      %1061 = vmatpush1.msra.mxu0 %v1010
      %1062 = vmatprep.subr.mxu0 0.0
      %1063 = vmatpush1.msra.mxu0 %v1009
      %1064 = vmatprep.subr.mxu0 0.0
      %1065 = vmatpush2.msra.mxu0 0.0
      %1066 = vmatprep.subr.mxu0 0.0
      %1067 = vmatpush2.msra.mxu0 0.0
      %1068 = vmatprep.subr.mxu0 0.0
      %1069 = vmatpush2.msra.mxu0 0.0
      %1070 = vmatprep.subr.mxu0 0.0
      %1071 = vmatpush2.msra.mxu0 0.0
      %1072 = vmatprep.subr.mxu0 0.0
      %1073 = vmatpush2.msra.mxu0 0.0
      %1074 = vmatprep.subr.mxu0 0.0
      %1075 = vmatpush2.msra.mxu0 0.0
      %1076 = vmatprep.subr.mxu0 0.0
      %1077 = vmatpush2.msra.mxu0 0.0
      %1078 = vmatprep.subr.mxu0 0.0
      %1079 = vmatpush2.msra.mxu0 0.0
      %1080 = vmatprep.subr.mxu0 0.0
      %1081 = vmatpush2.msra.mxu0 0.0
      %1082 = vmatprep.subr.mxu0 0.0
      %1083 = vmatpush2.msra.mxu0 0.0
      %1084 = vmatprep.subr.mxu0 0.0
      %1085 = vmatpush2.msra.mxu0 0.0
      %1086 = vmatprep.subr.mxu0 0.0
      %1087 = vmatpush2.msra.mxu0 0.0
      %1088 = vmatprep.subr.mxu0 0.0
      %1089 = vmatpush2.msra.mxu0 0.0
      %1090 = vmatprep.subr.mxu0 0.0
      %1091 = vmatpush2.msra.mxu0 0.0
      %1092 = vmatprep.subr.mxu0 0.0
      %1093 = vmatpush2.msra.mxu0 0.0
      %1094 = vmatprep.subr.mxu0 0.0
      %1095 = vmatpush2.msra.mxu0 0.0
      %1096 = vmatprep.mubr.f32.mxu0 0.0
      %1097 = vmatmul.mubr.f32.gmra.mxu0 %v1008
      %v1098 = vpop.f32.mrf.mxu0
      %v1099 = vadd.f32 %v1030, %v1098
      %v1100 = vpop.f32.mrf.mxu0
      %1101 = vdwg.mxu0
      %1102 = vst [vmem:[%s13] sm:$0xff] %v1099
    $region85: #{tc_hybrid_forward.1} parent=1 // pred_fallthru
      _
    // Predicated region
    $region86: #{tc_hybrid_forward.1} parent=1 // pred_check
      _
    $region87: #{tc_hybrid_forward.1} parent=1 // pred_check_branch
      %1104 = sbr.rel (0) target = $region89
    $region88: #{tc_hybrid_forward.1} parent=1 // pred_region
      _
    $region89: #{tc_hybrid_forward.1} parent=1 // pred_fallthru
      _
    // Predicated region
    $region90: #{tc_hybrid_forward.1} parent=1 // pred_check
      _
    $region91: #{tc_hybrid_forward.1} parent=1 // pred_check_branch
      %1106 = sbr.rel (0) target = $region93
    $region92: #{tc_hybrid_forward.1} parent=1 // pred_region
      _
    $region93: #{tc_hybrid_forward.1} parent=1 // pred_fallthru
      _
    %1107 = vsyncpa [#allocation4], 1
    %1108 = vsyncpa [#allocation6], 1
    %1109 = vsyncpa [#allocation9], 1
    %1110 = vsyncpa [#allocation12], 1

</llo_original>
